<compile_context>
chip_gen: v7x
topology: tpu7x:2x2x1
jax: 0.10.0
libtpu: 0.0.40
codegen_flags: <defaults>
</compile_context>

<pallas_src>
import jax
import jax.numpy as jnp
from jax.experimental import pallas as pl
from jax.experimental.pallas import tpu as pltpu

N_CLASSES = 7
OUT_PAD = 8                  # logits padded 7 -> 8 lanes (sliced back in wrapper)
H1, H2, H3 = 256, 256, 64    # hidden sizes of fc1/fc2/fc3

VMEM_BUDGET_BYTES = 40 << 20   # sizing budget for tb (fits v5e/v6e/v7x)
VMEM_LIMIT_BYTES = 48 << 20    # explicit scoped-VMEM limit (< v7x 64 MiB physical)


def _round_up(x, m):
    return (x + m - 1) // m * m


def _mlp_kernel(x_ref, w1_ref, b1_ref, w2_ref, b2_ref, w3_ref, b3_ref,
                w4_ref, b4_ref, o_ref):
    # x_ref: (tb, D) f32; weights bf16; biases f32; o_ref: (tb, OUT_PAD) f32.
    x = x_ref[...].astype(jnp.bfloat16)                 # cast in-register, not in HBM
    h = jnp.dot(x, w1_ref[...], preferred_element_type=jnp.float32)
    h = jnp.maximum(h + b1_ref[...], 0.0).astype(jnp.bfloat16)   # ReLU (dropout1 = id)

    h = jnp.dot(h, w2_ref[...], preferred_element_type=jnp.float32)
    h = jnp.maximum(h + b2_ref[...], 0.0).astype(jnp.bfloat16)   # ReLU (dropout2 = id)

    h = jnp.dot(h, w3_ref[...], preferred_element_type=jnp.float32)
    h = jnp.maximum(h + b3_ref[...], 0.0).astype(jnp.bfloat16)   # ReLU

    o_ref[...] = jnp.dot(h, w4_ref[...],
                         preferred_element_type=jnp.float32) + b4_ref[...]


def prepare_params(params):
    """One-time cast/pad of parameters (hoisted out of the per-call path)."""
    (w1, b1), (w2, b2), (w3, b3), (w4, b4) = params
    return (
        w1.astype(jnp.bfloat16), b1.astype(jnp.float32),
        w2.astype(jnp.bfloat16), b2.astype(jnp.float32),
        w3.astype(jnp.bfloat16), b3.astype(jnp.float32),
        jnp.pad(w4, ((0, 0), (0, OUT_PAD - N_CLASSES))).astype(jnp.bfloat16),
        jnp.pad(b4, ((0, 0), (0, OUT_PAD - N_CLASSES))).astype(jnp.float32),
    )


def _pick_tb(B, D, tb_max):
    tb = min(tb_max, _round_up(B, 8))
    # v7x: guarantee >=2 grid steps for large batches so the "parallel" axis
    # actually shards across both TensorCores (costs ~0.35us/step elsewhere).
    if B >= 256 and pl.cdiv(B, tb) < 2:
        tb = _round_up(pl.cdiv(B, 2), 8)
    # VMEM sizing: double-buffered f32 x tile + f32 out tile + f32/bf16 layer
    # intermediates per row, plus (conservatively double-buffered) weights.
    weight_bytes = (2 * 2 * (D * H1 + H1 * H2 + H2 * H3 + H3 * OUT_PAD)
                    + 2 * 4 * (H1 + H2 + H3 + OUT_PAD))
    per_row_bytes = 2 * 4 * D + 2 * 4 * OUT_PAD + 6 * (H1 + H2 + H3)
    tb_fit = max(8, ((VMEM_BUDGET_BYTES - weight_bytes) // per_row_bytes) // 8 * 8)
    return max(8, min(tb, tb_fit))


def face_expr_net_forward(x, prepared, *, tb_max=512):
    """x: (B, landmark_num, chns) float32. Returns (B, 7) float32 logits."""
    B = x.shape[0]
    x_flat = x.reshape(B, -1).astype(jnp.float32)   # nn.Flatten(); no pad/cast pass
    D = x_flat.shape[1]

    tb = _pick_tb(B, D, tb_max)
    grid = (pl.cdiv(B, tb),)

    flops = 2 * B * (D * H1 + H1 * H2 + H2 * H3 + H3 * OUT_PAD)
    bytes_accessed = (B * D * 4
                      + 2 * (D * H1 + H1 * H2 + H2 * H3 + H3 * OUT_PAD)
                      + 4 * (H1 + H2 + H3 + OUT_PAD)
                      + B * OUT_PAD * 4)

    def run(single_buffer_weights):
        res_kwargs = ({"pipeline_mode": pl.Buffered(1)}
                      if single_buffer_weights else {})

        def resident(shape):
            # Constant index_map: weights/biases stay VMEM-resident, DMA'd once.
            return pl.BlockSpec(shape, lambda i: (0, 0), **res_kwargs)

        in_specs = [
            pl.BlockSpec((tb, D), lambda i: (i, 0)),        # x: tiled over batch
            resident((D, H1)), resident((1, H1)),
            resident((H1, H2)), resident((1, H2)),
            resident((H2, H3)), resident((1, H3)),
            resident((H3, OUT_PAD)), resident((1, OUT_PAD)),
        ]
        return pl.pallas_call(
            _mlp_kernel,
            out_shape=jax.ShapeDtypeStruct((B, OUT_PAD), jnp.float32),
            grid=grid,
            in_specs=in_specs,
            out_specs=pl.BlockSpec((tb, OUT_PAD), lambda i: (i, 0)),
            compiler_params=pltpu.CompilerParams(
                dimension_semantics=("parallel",),
                vmem_limit_bytes=VMEM_LIMIT_BYTES),
            cost_estimate=pl.CostEstimate(
                flops=flops, transcendentals=0, bytes_accessed=bytes_accessed),
        )(x_flat, *prepared)

    try:
        out = run(True)          # single-buffered resident weights
    except Exception:
        out = run(False)         # fallback if pipeline_mode/Buffered(1) unsupported

    # Padded logit column (index 7) is exactly 0.0 and is sliced off here; the
    # 8-wide slab must never be consumed directly (e.g. by softmax/argmax).
    return out[:, :N_CLASSES]


def init_params(key, landmark_num, chns):
    """Deterministic init matching the nn.Linear shapes of FaceExprNet.

    PyTorch Linear stores weight as (out, in) and computes x @ W.T + b; here we
    materialize W already transposed to (in, out) for the kernel.
    """
    d_in = landmark_num * chns
    dims = [(d_in, H1), (H1, H2), (H2, H3), (H3, N_CLASSES)]
    params = []
    for (fan_in, fan_out) in dims:
        key, kw, kb = jax.random.split(key, 3)
        bound = 1.0 / jnp.sqrt(jnp.float32(fan_in))
        w = jax.random.uniform(kw, (fan_in, fan_out), jnp.float32, -bound, bound)
        b = jax.random.uniform(kb, (1, fan_out), jnp.float32, -bound, bound)
        params.append((w, b))
    return params


def reference_forward(x, params):
    """Pure-JAX reference mirroring the kernel's bf16-operand / f32-accumulate math."""
    h = x.reshape(x.shape[0], -1)
    (w1, b1), (w2, b2), (w3, b3), (w4, b4) = params

    def lin(h, w, b):
        return jnp.dot(h.astype(jnp.bfloat16), w.astype(jnp.bfloat16),
                       preferred_element_type=jnp.float32) + b

    h = jnp.maximum(lin(h, w1, b1), 0.0)
    h = jnp.maximum(lin(h, w2, b2), 0.0)
    h = jnp.maximum(lin(h, w3, b3), 0.0)
    return lin(h, w4, b4)


if __name__ == "__main__":
    landmark_num, chns = 8, 4   # small synthetic sizes; D = 32
    batch = 2

    key = jax.random.PRNGKey(0)
    key, kx, kx2 = jax.random.split(key, 3)
    x = jax.random.normal(kx, (batch, landmark_num, chns), jnp.float32)

    params = init_params(key, landmark_num, chns)
    prepared = prepare_params(params)   # one-time param cast/pad (hoisted)

    # Small batch: single (partial) grid step.
    out = jax.block_until_ready(face_expr_net_forward(x, prepared))
    ref = reference_forward(x, params)
    assert out.shape == (batch, 7), out.shape
    assert jnp.allclose(out, ref, atol=2e-3, rtol=2e-3), "mismatch vs reference (small batch)"

    # Larger, non-multiple batch: multi-tile grid with a partial last block.
    x_big = jax.random.normal(kx2, (300, landmark_num, chns), jnp.float32)
    out_big = jax.block_until_ready(face_expr_net_forward(x_big, prepared, tb_max=128))
    ref_big = reference_forward(x_big, params)
    assert out_big.shape == (300, 7), out_big.shape
    assert jnp.allclose(out_big, ref_big, atol=2e-3, rtol=2e-3), "mismatch vs reference (batched grid)"

    print("KERNEL_OK")
</pallas_src>

<mosaic_0001>
module attributes {stable_mosaic.version = 11 : i64} {
  func.func @_mlp_kernel(%arg0: i32, %arg1: memref<8x32xf32, #tpu.memory_space<vmem>>, %arg2: memref<32x256xbf16, #tpu.memory_space<vmem>>, %arg3: memref<1x256xf32, #tpu.memory_space<vmem>>, %arg4: memref<256x256xbf16, #tpu.memory_space<vmem>>, %arg5: memref<1x256xf32, #tpu.memory_space<vmem>>, %arg6: memref<256x64xbf16, #tpu.memory_space<vmem>>, %arg7: memref<1x64xf32, #tpu.memory_space<vmem>>, %arg8: memref<64x8xbf16, #tpu.memory_space<vmem>>, %arg9: memref<1x8xf32, #tpu.memory_space<vmem>>, %arg10: memref<8x8xf32, #tpu.memory_space<vmem>>) attributes {dimension_semantics = [#tpu.dimension_semantics<parallel>], iteration_bounds = array<i64: 1>, scalar_prefetch = 0 : i64, scratch_operands = 0 : i64, tpu.core_type = #tpu.core_type<tc>, window_params = [{transform_indices = @transform_0, window_bounds = array<i64: 8, 32>}, {pipeline_mode = #tpu.pipeline_mode<synchronous>, transform_indices = @transform_1, window_bounds = array<i64: 32, 256>}, {pipeline_mode = #tpu.pipeline_mode<synchronous>, transform_indices = @transform_2, window_bounds = array<i64: 1, 256>}, {pipeline_mode = #tpu.pipeline_mode<synchronous>, transform_indices = @transform_3, window_bounds = array<i64: 256, 256>}, {pipeline_mode = #tpu.pipeline_mode<synchronous>, transform_indices = @transform_4, window_bounds = array<i64: 1, 256>}, {pipeline_mode = #tpu.pipeline_mode<synchronous>, transform_indices = @transform_5, window_bounds = array<i64: 256, 64>}, {pipeline_mode = #tpu.pipeline_mode<synchronous>, transform_indices = @transform_6, window_bounds = array<i64: 1, 64>}, {pipeline_mode = #tpu.pipeline_mode<synchronous>, transform_indices = @transform_7, window_bounds = array<i64: 64, 8>}, {pipeline_mode = #tpu.pipeline_mode<synchronous>, transform_indices = @transform_8, window_bounds = array<i64: 1, 8>}, {transform_indices = @transform_9, window_bounds = array<i64: 8, 8>}]} {
    %c0 = arith.constant 0 : index
    %c0_0 = arith.constant 0 : index
    %0 = vector.load %arg1[%c0, %c0_0] : memref<8x32xf32, #tpu.memory_space<vmem>>, vector<8x32xf32>
    %1 = arith.truncf %0 : vector<8x32xf32> to vector<8x32xbf16>
    %c0_1 = arith.constant 0 : index
    %c0_2 = arith.constant 0 : index
    %2 = vector.load %arg2[%c0_1, %c0_2] : memref<32x256xbf16, #tpu.memory_space<vmem>>, vector<32x256xbf16>
    %cst = arith.constant dense<0.000000e+00> : vector<8x256xf32>
    %3 = tpu.matmul %1, %2, %cst {dimension_numbers = #tpu.dot_dimension_numbers<[1], [0], [0], [1], [0, 0, 1, 1], [], []>} : vector<8x32xbf16>, vector<32x256xbf16>, vector<8x256xf32> -> vector<8x256xf32>
    %c0_3 = arith.constant 0 : index
    %c0_4 = arith.constant 0 : index
    %4 = vector.load %arg3[%c0_3, %c0_4] : memref<1x256xf32, #tpu.memory_space<vmem>>, vector<1x256xf32>
    %5 = vector.broadcast %4 : vector<1x256xf32> to vector<8x256xf32>
    %6 = arith.addf %3, %5 : vector<8x256xf32>
    %cst_5 = arith.constant 0.000000e+00 : f32
    %7 = vector.broadcast %cst_5 : f32 to vector<8x256xf32>
    %8 = arith.maximumf %6, %7 : vector<8x256xf32>
    %9 = arith.truncf %8 : vector<8x256xf32> to vector<8x256xbf16>
    %c0_6 = arith.constant 0 : index
    %c0_7 = arith.constant 0 : index
    %10 = vector.load %arg4[%c0_6, %c0_7] : memref<256x256xbf16, #tpu.memory_space<vmem>>, vector<256x256xbf16>
    %cst_8 = arith.constant dense<0.000000e+00> : vector<8x256xf32>
    %11 = tpu.matmul %9, %10, %cst_8 {dimension_numbers = #tpu.dot_dimension_numbers<[1], [0], [0], [1], [0, 0, 1, 1], [], []>} : vector<8x256xbf16>, vector<256x256xbf16>, vector<8x256xf32> -> vector<8x256xf32>
    %c0_9 = arith.constant 0 : index
    %c0_10 = arith.constant 0 : index
    %12 = vector.load %arg5[%c0_9, %c0_10] : memref<1x256xf32, #tpu.memory_space<vmem>>, vector<1x256xf32>
    %13 = vector.broadcast %12 : vector<1x256xf32> to vector<8x256xf32>
    %14 = arith.addf %11, %13 : vector<8x256xf32>
    %cst_11 = arith.constant 0.000000e+00 : f32
    %15 = vector.broadcast %cst_11 : f32 to vector<8x256xf32>
    %16 = arith.maximumf %14, %15 : vector<8x256xf32>
    %17 = arith.truncf %16 : vector<8x256xf32> to vector<8x256xbf16>
    %c0_12 = arith.constant 0 : index
    %c0_13 = arith.constant 0 : index
    %18 = vector.load %arg6[%c0_12, %c0_13] : memref<256x64xbf16, #tpu.memory_space<vmem>>, vector<256x64xbf16>
    %cst_14 = arith.constant dense<0.000000e+00> : vector<8x64xf32>
    %19 = tpu.matmul %17, %18, %cst_14 {dimension_numbers = #tpu.dot_dimension_numbers<[1], [0], [0], [1], [0, 0, 1, 1], [], []>} : vector<8x256xbf16>, vector<256x64xbf16>, vector<8x64xf32> -> vector<8x64xf32>
    %c0_15 = arith.constant 0 : index
    %c0_16 = arith.constant 0 : index
    %20 = vector.load %arg7[%c0_15, %c0_16] : memref<1x64xf32, #tpu.memory_space<vmem>>, vector<1x64xf32>
    %21 = vector.broadcast %20 : vector<1x64xf32> to vector<8x64xf32>
    %22 = arith.addf %19, %21 : vector<8x64xf32>
    %cst_17 = arith.constant 0.000000e+00 : f32
    %23 = vector.broadcast %cst_17 : f32 to vector<8x64xf32>
    %24 = arith.maximumf %22, %23 : vector<8x64xf32>
    %25 = arith.truncf %24 : vector<8x64xf32> to vector<8x64xbf16>
    %c0_18 = arith.constant 0 : index
    %c0_19 = arith.constant 0 : index
    %26 = vector.load %arg8[%c0_18, %c0_19] : memref<64x8xbf16, #tpu.memory_space<vmem>>, vector<64x8xbf16>
    %cst_20 = arith.constant dense<0.000000e+00> : vector<8x8xf32>
    %27 = tpu.matmul %25, %26, %cst_20 {dimension_numbers = #tpu.dot_dimension_numbers<[1], [0], [0], [1], [0, 0, 1, 1], [], []>} : vector<8x64xbf16>, vector<64x8xbf16>, vector<8x8xf32> -> vector<8x8xf32>
    %c0_21 = arith.constant 0 : index
    %c0_22 = arith.constant 0 : index
    %28 = vector.load %arg9[%c0_21, %c0_22] : memref<1x8xf32, #tpu.memory_space<vmem>>, vector<1x8xf32>
    %29 = vector.broadcast %28 : vector<1x8xf32> to vector<8x8xf32>
    %30 = arith.addf %27, %29 : vector<8x8xf32>
    %c0_23 = arith.constant 0 : index
    %c0_24 = arith.constant 0 : index
    %31 = vector.load %arg10[%c0_23, %c0_24] : memref<8x8xf32, #tpu.memory_space<vmem>>, vector<8x8xf32>
    tpu.vector_store %arg10[%c0_23, %c0_24], %30 {strides = array<i32>} : memref<8x8xf32, #tpu.memory_space<vmem>>, vector<8x8xf32>,
    return
  }
  func.func @transform_0(%arg0: i32) -> (i32, i32) {
    %c0_i32 = arith.constant 0 : i32
    %c0_i32_0 = arith.constant 0 : i32
    return %arg0, %c0_i32 : i32, i32
  }
  func.func @transform_1(%arg0: i32) -> (i32, i32) {
    %c0_i32 = arith.constant 0 : i32
    %c0_i32_0 = arith.constant 0 : i32
    %c0_i32_1 = arith.constant 0 : i32
    return %c0_i32, %c0_i32_0 : i32, i32
  }
  func.func @transform_2(%arg0: i32) -> (i32, i32) {
    %c0_i32 = arith.constant 0 : i32
    %c0_i32_0 = arith.constant 0 : i32
    %c0_i32_1 = arith.constant 0 : i32
    return %c0_i32, %c0_i32_0 : i32, i32
  }
  func.func @transform_3(%arg0: i32) -> (i32, i32) {
    %c0_i32 = arith.constant 0 : i32
    %c0_i32_0 = arith.constant 0 : i32
    %c0_i32_1 = arith.constant 0 : i32
    return %c0_i32, %c0_i32_0 : i32, i32
  }
  func.func @transform_4(%arg0: i32) -> (i32, i32) {
    %c0_i32 = arith.constant 0 : i32
    %c0_i32_0 = arith.constant 0 : i32
    %c0_i32_1 = arith.constant 0 : i32
    return %c0_i32, %c0_i32_0 : i32, i32
  }
  func.func @transform_5(%arg0: i32) -> (i32, i32) {
    %c0_i32 = arith.constant 0 : i32
    %c0_i32_0 = arith.constant 0 : i32
    %c0_i32_1 = arith.constant 0 : i32
    return %c0_i32, %c0_i32_0 : i32, i32
  }
  func.func @transform_6(%arg0: i32) -> (i32, i32) {
    %c0_i32 = arith.constant 0 : i32
    %c0_i32_0 = arith.constant 0 : i32
    %c0_i32_1 = arith.constant 0 : i32
    return %c0_i32, %c0_i32_0 : i32, i32
  }
  func.func @transform_7(%arg0: i32) -> (i32, i32) {
    %c0_i32 = arith.constant 0 : i32
    %c0_i32_0 = arith.constant 0 : i32
    %c0_i32_1 = arith.constant 0 : i32
    return %c0_i32, %c0_i32_0 : i32, i32
  }
  func.func @transform_8(%arg0: i32) -> (i32, i32) {
    %c0_i32 = arith.constant 0 : i32
    %c0_i32_0 = arith.constant 0 : i32
    %c0_i32_1 = arith.constant 0 : i32
    return %c0_i32, %c0_i32_0 : i32, i32
  }
  func.func @transform_9(%arg0: i32) -> (i32, i32) {
    %c0_i32 = arith.constant 0 : i32
    %c0_i32_0 = arith.constant 0 : i32
    return %arg0, %c0_i32 : i32, i32
  }
}

module attributes {stable_mosaic.version = 11 : i64} {
  func.func @_mlp_kernel(%arg0: i32, %arg1: memref<8x32xf32, #tpu.memory_space<vmem>>, %arg2: memref<32x256xbf16, #tpu.memory_space<vmem>>, %arg3: memref<1x256xf32, #tpu.memory_space<vmem>>, %arg4: memref<256x256xbf16, #tpu.memory_space<vmem>>, %arg5: memref<1x256xf32, #tpu.memory_space<vmem>>, %arg6: memref<256x64xbf16, #tpu.memory_space<vmem>>, %arg7: memref<1x64xf32, #tpu.memory_space<vmem>>, %arg8: memref<64x8xbf16, #tpu.memory_space<vmem>>, %arg9: memref<1x8xf32, #tpu.memory_space<vmem>>, %arg10: memref<8x8xf32, #tpu.memory_space<vmem>>) attributes {dimension_semantics = [#tpu.dimension_semantics<parallel>], iteration_bounds = array<i64: 1>, scalar_prefetch = 0 : i64, scratch_operands = 0 : i64, tpu.core_type = #tpu.core_type<tc>, window_params = [{transform_indices = @transform_0, window_bounds = array<i64: 8, 32>}, {pipeline_mode = #tpu.pipeline_mode<synchronous>, transform_indices = @transform_1, window_bounds = array<i64: 32, 256>}, {pipeline_mode = #tpu.pipeline_mode<synchronous>, transform_indices = @transform_2, window_bounds = array<i64: 1, 256>}, {pipeline_mode = #tpu.pipeline_mode<synchronous>, transform_indices = @transform_3, window_bounds = array<i64: 256, 256>}, {pipeline_mode = #tpu.pipeline_mode<synchronous>, transform_indices = @transform_4, window_bounds = array<i64: 1, 256>}, {pipeline_mode = #tpu.pipeline_mode<synchronous>, transform_indices = @transform_5, window_bounds = array<i64: 256, 64>}, {pipeline_mode = #tpu.pipeline_mode<synchronous>, transform_indices = @transform_6, window_bounds = array<i64: 1, 64>}, {pipeline_mode = #tpu.pipeline_mode<synchronous>, transform_indices = @transform_7, window_bounds = array<i64: 64, 8>}, {pipeline_mode = #tpu.pipeline_mode<synchronous>, transform_indices = @transform_8, window_bounds = array<i64: 1, 8>}, {transform_indices = @transform_9, window_bounds = array<i64: 8, 8>}]} {
    %c0 = arith.constant 0 : index
    %c0_0 = arith.constant 0 : index
    %0 = vector.load %arg1[%c0, %c0_0] : memref<8x32xf32, #tpu.memory_space<vmem>>, vector<8x32xf32>
    %1 = arith.truncf %0 : vector<8x32xf32> to vector<8x32xbf16>
    %c0_1 = arith.constant 0 : index
    %c0_2 = arith.constant 0 : index
    %2 = vector.load %arg2[%c0_1, %c0_2] : memref<32x256xbf16, #tpu.memory_space<vmem>>, vector<32x256xbf16>
    %cst = arith.constant dense<0.000000e+00> : vector<8x256xf32>
    %3 = tpu.matmul %1, %2, %cst {dimension_numbers = #tpu.dot_dimension_numbers<[1], [0], [0], [1], [0, 0, 1, 1], [], []>} : vector<8x32xbf16>, vector<32x256xbf16>, vector<8x256xf32> -> vector<8x256xf32>
    %c0_3 = arith.constant 0 : index
    %c0_4 = arith.constant 0 : index
    %4 = vector.load %arg3[%c0_3, %c0_4] : memref<1x256xf32, #tpu.memory_space<vmem>>, vector<1x256xf32>
    %5 = vector.broadcast %4 : vector<1x256xf32> to vector<8x256xf32>
    %6 = arith.addf %3, %5 : vector<8x256xf32>
    %cst_5 = arith.constant 0.000000e+00 : f32
    %7 = vector.broadcast %cst_5 : f32 to vector<8x256xf32>
    %8 = arith.maximumf %6, %7 : vector<8x256xf32>
    %9 = arith.truncf %8 : vector<8x256xf32> to vector<8x256xbf16>
    %c0_6 = arith.constant 0 : index
    %c0_7 = arith.constant 0 : index
    %10 = vector.load %arg4[%c0_6, %c0_7] : memref<256x256xbf16, #tpu.memory_space<vmem>>, vector<256x256xbf16>
    %cst_8 = arith.constant dense<0.000000e+00> : vector<8x256xf32>
    %11 = tpu.matmul %9, %10, %cst_8 {dimension_numbers = #tpu.dot_dimension_numbers<[1], [0], [0], [1], [0, 0, 1, 1], [], []>} : vector<8x256xbf16>, vector<256x256xbf16>, vector<8x256xf32> -> vector<8x256xf32>
    %c0_9 = arith.constant 0 : index
    %c0_10 = arith.constant 0 : index
    %12 = vector.load %arg5[%c0_9, %c0_10] : memref<1x256xf32, #tpu.memory_space<vmem>>, vector<1x256xf32>
    %13 = vector.broadcast %12 : vector<1x256xf32> to vector<8x256xf32>
    %14 = arith.addf %11, %13 : vector<8x256xf32>
    %cst_11 = arith.constant 0.000000e+00 : f32
    %15 = vector.broadcast %cst_11 : f32 to vector<8x256xf32>
    %16 = arith.maximumf %14, %15 : vector<8x256xf32>
    %17 = arith.truncf %16 : vector<8x256xf32> to vector<8x256xbf16>
    %c0_12 = arith.constant 0 : index
    %c0_13 = arith.constant 0 : index
    %18 = vector.load %arg6[%c0_12, %c0_13] : memref<256x64xbf16, #tpu.memory_space<vmem>>, vector<256x64xbf16>
    %cst_14 = arith.constant dense<0.000000e+00> : vector<8x64xf32>
    %19 = tpu.matmul %17, %18, %cst_14 {dimension_numbers = #tpu.dot_dimension_numbers<[1], [0], [0], [1], [0, 0, 1, 1], [], []>} : vector<8x256xbf16>, vector<256x64xbf16>, vector<8x64xf32> -> vector<8x64xf32>
    %c0_15 = arith.constant 0 : index
    %c0_16 = arith.constant 0 : index
    %20 = vector.load %arg7[%c0_15, %c0_16] : memref<1x64xf32, #tpu.memory_space<vmem>>, vector<1x64xf32>
    %21 = vector.broadcast %20 : vector<1x64xf32> to vector<8x64xf32>
    %22 = arith.addf %19, %21 : vector<8x64xf32>
    %cst_17 = arith.constant 0.000000e+00 : f32
    %23 = vector.broadcast %cst_17 : f32 to vector<8x64xf32>
    %24 = arith.maximumf %22, %23 : vector<8x64xf32>
    %25 = arith.truncf %24 : vector<8x64xf32> to vector<8x64xbf16>
    %c0_18 = arith.constant 0 : index
    %c0_19 = arith.constant 0 : index
    %26 = vector.load %arg8[%c0_18, %c0_19] : memref<64x8xbf16, #tpu.memory_space<vmem>>, vector<64x8xbf16>
    %cst_20 = arith.constant dense<0.000000e+00> : vector<8x8xf32>
    %27 = tpu.matmul %25, %26, %cst_20 {dimension_numbers = #tpu.dot_dimension_numbers<[1], [0], [0], [1], [0, 0, 1, 1], [], []>} : vector<8x64xbf16>, vector<64x8xbf16>, vector<8x8xf32> -> vector<8x8xf32>
    %c0_21 = arith.constant 0 : index
    %c0_22 = arith.constant 0 : index
    %28 = vector.load %arg9[%c0_21, %c0_22] : memref<1x8xf32, #tpu.memory_space<vmem>>, vector<1x8xf32>
    %29 = vector.broadcast %28 : vector<1x8xf32> to vector<8x8xf32>
    %30 = arith.addf %27, %29 : vector<8x8xf32>
    %c0_23 = arith.constant 0 : index
    %c0_24 = arith.constant 0 : index
    %31 = vector.load %arg10[%c0_23, %c0_24] : memref<8x8xf32, #tpu.memory_space<vmem>>, vector<8x8xf32>
    tpu.vector_store %arg10[%c0_23, %c0_24], %30 {strides = array<i32>} : memref<8x8xf32, #tpu.memory_space<vmem>>, vector<8x8xf32>,
    return
  }
  func.func @transform_0(%arg0: i32) -> (i32, i32) {
    %c0_i32 = arith.constant 0 : i32
    %c0_i32_0 = arith.constant 0 : i32
    return %arg0, %c0_i32 : i32, i32
  }
  func.func @transform_1(%arg0: i32) -> (i32, i32) {
    %c0_i32 = arith.constant 0 : i32
    %c0_i32_0 = arith.constant 0 : i32
    %c0_i32_1 = arith.constant 0 : i32
    return %c0_i32, %c0_i32_0 : i32, i32
  }
  func.func @transform_2(%arg0: i32) -> (i32, i32) {
    %c0_i32 = arith.constant 0 : i32
    %c0_i32_0 = arith.constant 0 : i32
    %c0_i32_1 = arith.constant 0 : i32
    return %c0_i32, %c0_i32_0 : i32, i32
  }
  func.func @transform_3(%arg0: i32) -> (i32, i32) {
    %c0_i32 = arith.constant 0 : i32
    %c0_i32_0 = arith.constant 0 : i32
    %c0_i32_1 = arith.constant 0 : i32
    return %c0_i32, %c0_i32_0 : i32, i32
  }
  func.func @transform_4(%arg0: i32) -> (i32, i32) {
    %c0_i32 = arith.constant 0 : i32
    %c0_i32_0 = arith.constant 0 : i32
    %c0_i32_1 = arith.constant 0 : i32
    return %c0_i32, %c0_i32_0 : i32, i32
  }
  func.func @transform_5(%arg0: i32) -> (i32, i32) {
    %c0_i32 = arith.constant 0 : i32
    %c0_i32_0 = arith.constant 0 : i32
    %c0_i32_1 = arith.constant 0 : i32
    return %c0_i32, %c0_i32_0 : i32, i32
  }
  func.func @transform_6(%arg0: i32) -> (i32, i32) {
    %c0_i32 = arith.constant 0 : i32
    %c0_i32_0 = arith.constant 0 : i32
    %c0_i32_1 = arith.constant 0 : i32
    return %c0_i32, %c0_i32_0 : i32, i32
  }
  func.func @transform_7(%arg0: i32) -> (i32, i32) {
    %c0_i32 = arith.constant 0 : i32
    %c0_i32_0 = arith.constant 0 : i32
    %c0_i32_1 = arith.constant 0 : i32
    return %c0_i32, %c0_i32_0 : i32, i32
  }
  func.func @transform_8(%arg0: i32) -> (i32, i32) {
    %c0_i32 = arith.constant 0 : i32
    %c0_i32_0 = arith.constant 0 : i32
    %c0_i32_1 = arith.constant 0 : i32
    return %c0_i32, %c0_i32_0 : i32, i32
  }
  func.func @transform_9(%arg0: i32) -> (i32, i32) {
    %c0_i32 = arith.constant 0 : i32
    %c0_i32_0 = arith.constant 0 : i32
    return %arg0, %c0_i32 : i32, i32
  }
}

</mosaic_0001>

<llo_original>
// kernel: tpu_custom_call.1
$region0: #{tpu_custom_call.1}
  #allocation0 [shape = 'u32[]', space=smem, size = 0x4, offset = 0x4, fixed_abs, tag = 'smem constant byte address 0x4 - core index']
  #allocation1 [shape = 'u32[144,128]{1,0:T(1,128)}', space=vmem, size = 0x12000, scoped, tag = 'internal scratch']
  %s0 = inlined_call_operand.vmem [shape: f32[2,32], index: 0, kind: input, shape index: {}]
  %s1 = inlined_call_operand.vmem [shape: bf16[32,256], index: 1, kind: input, shape index: {}]
  %s2 = inlined_call_operand.vmem [shape: f32[1,256], index: 2, kind: input, shape index: {}]
  %s3 = inlined_call_operand.hbm [shape: bf16[256,256], index: 3, kind: input, shape index: {}]
  %s4 = inlined_call_operand.vmem [shape: f32[1,256], index: 4, kind: input, shape index: {}]
  %s5 = inlined_call_operand.vmem [shape: bf16[256,64], index: 5, kind: input, shape index: {}]
  %s6 = inlined_call_operand.vmem [shape: f32[1,64], index: 6, kind: input, shape index: {}]
  %s7 = inlined_call_operand.vmem [shape: bf16[64,8], index: 7, kind: input, shape index: {}]
  %s8 = inlined_call_operand.vmem [shape: f32[1,8], index: 8, kind: input, shape index: {}]
  %s9 = inlined_call_operand.hbm [shape: f32[2,8], index: 9, kind: output, shape index: {}]
  %s10 = sld [smem:[#allocation0]]
  $region50: #{tpu_custom_call.1} parent=0
    _
  %s12 = ssub.s32 1, %s10
  %s13 = scalar_select 0, %s12, %s10
  $region1: #{tpu_custom_call.1} parent=0
    #allocation2 [shape = 'u8[131072]{0}', space=vmem, size = 0x20000, scoped, tag = 'input window, operand 3, single buffered']
    #allocation3 [shape = 's32[1]{0}', space=sflag, size = 0x4, scoped, tag = 'scoped memory for tpu_custom_call.1']
    #allocation4 [shape = 's32[1]{0}', space=sflag, size = 0x4, scoped, tag = 'scoped memory for tpu_custom_call.1']
    #allocation5 [shape = 'u8[4096]{0}', space=vmem, size = 0x1000, scoped, tag = 'output window, operand 0, single buffered']
    %14 = vsyncpa [#allocation3], 0
    %15 = vsyncpa [#allocation4], 0
    // Predicated region
    $region2: #{tpu_custom_call.1} parent=1 // pred_check
      _
    $region3: #{tpu_custom_call.1} parent=1 // pred_check_branch
      %17 = sbr.rel (0) target = $region5
    $region4: #{tpu_custom_call.1} parent=1 // pred_region
      _
    $region5: #{tpu_custom_call.1} parent=1 // pred_fallthru
      _
    // Predicated region
    $region6: #{tpu_custom_call.1} parent=1 // pred_check
      _
    $region7: #{tpu_custom_call.1} parent=1 // pred_check_branch
      %19 = sbr.rel (0) target = $region9
    $region8: #{tpu_custom_call.1} parent=1 // pred_region
      _
    $region9: #{tpu_custom_call.1} parent=1 // pred_fallthru
      _
    // Predicated region
    $region10: #{tpu_custom_call.1} parent=1 // pred_check
      _
    $region11: #{tpu_custom_call.1} parent=1 // pred_check_branch
      %21 = sbr.rel (0) target = $region13
    $region12: #{tpu_custom_call.1} parent=1 // pred_region
      _
    $region13: #{tpu_custom_call.1} parent=1 // pred_fallthru
      _
    // Predicated region
    $region14: #{tpu_custom_call.1} parent=1 // pred_check
      _
    $region15: #{tpu_custom_call.1} parent=1 // pred_check_branch
      %23 = sbr.rel (0) target = $region17
    $region16: #{tpu_custom_call.1} parent=1 // pred_region
      %s25 = ssub.s32 4096, 4096
      %26 = vsyncadd [#allocation3], %s25
      %s27 = sshll.u32 [#allocation2], 4
      %s28 = int_to_ptr.vmem [resolvable:$true] %s27
      %33 = dma.hbm_to_vmem [thread:$0]  %s3, 4096, %s28, [#allocation3], 128, 128, 8
    $region17: #{tpu_custom_call.1} parent=1 // pred_fallthru
      _
    // Predicated region
    $region18: #{tpu_custom_call.1} parent=1 // pred_check
      _
    $region19: #{tpu_custom_call.1} parent=1 // pred_check_branch
      %35 = sbr.rel (0) target = $region21
    $region20: #{tpu_custom_call.1} parent=1 // pred_region
      _
    $region21: #{tpu_custom_call.1} parent=1 // pred_fallthru
      _
    // Predicated region
    $region22: #{tpu_custom_call.1} parent=1 // pred_check
      _
    $region23: #{tpu_custom_call.1} parent=1 // pred_check_branch
      %37 = sbr.rel (0) target = $region25
    $region24: #{tpu_custom_call.1} parent=1 // pred_region
      _
    $region25: #{tpu_custom_call.1} parent=1 // pred_fallthru
      _
    // Predicated region
    $region26: #{tpu_custom_call.1} parent=1 // pred_check
      _
    $region27: #{tpu_custom_call.1} parent=1 // pred_check_branch
      %39 = sbr.rel (0) target = $region29
    $region28: #{tpu_custom_call.1} parent=1 // pred_region
      _
    $region29: #{tpu_custom_call.1} parent=1 // pred_fallthru
      _
    // Predicated region
    $region30: #{tpu_custom_call.1} parent=1 // pred_check
      _
    $region31: #{tpu_custom_call.1} parent=1 // pred_check_branch
      %41 = sbr.rel (0) target = $region33
    $region32: #{tpu_custom_call.1} parent=1 // pred_region
      _
    $region33: #{tpu_custom_call.1} parent=1 // pred_fallthru
      _
    // Predicated region
    $region34: #{tpu_custom_call.1} parent=1 // pred_check
      _
    $region35: #{tpu_custom_call.1} parent=1 // pred_check_branch
      %43 = sbr.rel (0) target = $region37
    $region36: #{tpu_custom_call.1} parent=1 // pred_region
      _
    $region37: #{tpu_custom_call.1} parent=1 // pred_fallthru
      _
    // Predicated region
    $region38: #{tpu_custom_call.1} parent=1 // pred_check
      _
    $region39: #{tpu_custom_call.1} parent=1 // pred_check_branch
      %45 = sbr.rel (0) target = $region41
    $region40: #{tpu_custom_call.1} parent=1 // pred_region
      %46 = dma.done [#allocation3], 4096
    $region41: #{tpu_custom_call.1} parent=1 // pred_fallthru
      _
    %v48 = vld [vmem:[%s0] sm:$0xff]
    %v49 = vpack.c.bf16 %v48, %v48
    %v50 = vld [vmem:[%s1] sm:$0xff]
    %v51 = vld [vmem:[%s1 + $0x8] sm:$0xff]
    %v52 = vld [vmem:[%s1 + $0x10] sm:$0xff]
    %v53 = vld [vmem:[%s1 + $0x18] sm:$0xff]
    %v54 = vld [vmem:[%s2] sm:$0x3]
    %v56 = vlaneseq
    %v57 = vshrl.u32 %v56, 7
    %v58 = vsub.s32 0, %v57
    %v59 = vrot.slane %v54, %v58
    %v60 = vlaneseq
    %v61 = vshrl.u32 %v60, 7
    %v62 = vsub.s32 1, %v61
    %v63 = vrot.slane %v54, %v62
    %v70 = vunpack.c.l.b16 %v50
    %v71 = vunpack.c.h.b16 %v50
    %v72 = vunpack.c.l.b16 %v51
    %v73 = vunpack.c.h.b16 %v51
    %v74 = vunpack.c.l.b16 %v52
    %v75 = vunpack.c.h.b16 %v52
    %v76 = vunpack.c.l.b16 %v53
    %v77 = vunpack.c.h.b16 %v53
    %v78 = vpack.c.b16 %v72, %v70
    %v79 = vpack.c.b16 %v73, %v71
    %v80 = vpack.c.b16 %v76, %v74
    %v81 = vpack.c.b16 %v77, %v75
    %vm86 = vcmask 261120
    %v88 = vsel %vm86, %v49, 0
    %90 = vmatprep.subr.bf16.mxu0 %v79
    %91 = vmatpush1.bf16.msra.mxu0 %v78
    %92 = vmatprep.subr.bf16.mxu0 %v81
    %93 = vmatpush1.bf16.msra.mxu0 %v80
    %94 = vmatprep.subr.bf16.mxu0 0
    %95 = vmatpush1.bf16.msra.mxu0 0
    %96 = vmatprep.subr.bf16.mxu0 0
    %97 = vmatpush1.bf16.msra.mxu0 0
    %98 = vmatprep.subr.bf16.mxu0 0
    %99 = vmatpush1.bf16.msra.mxu0 0
    %100 = vmatprep.subr.bf16.mxu0 0
    %101 = vmatpush1.bf16.msra.mxu0 0
    %102 = vmatprep.subr.bf16.mxu0 0
    %103 = vmatpush1.bf16.msra.mxu0 0
    %104 = vmatprep.subr.bf16.mxu0 0
    %105 = vmatpush1.bf16.msra.mxu0 0
    %106 = vmatprep.subr.bf16.mxu0 0
    %107 = vmatpush1.bf16.msra.mxu0 0
    %108 = vmatprep.subr.bf16.mxu0 0
    %109 = vmatpush1.bf16.msra.mxu0 0
    %110 = vmatprep.subr.bf16.mxu0 0
    %111 = vmatpush1.bf16.msra.mxu0 0
    %112 = vmatprep.subr.bf16.mxu0 0
    %113 = vmatpush1.bf16.msra.mxu0 0
    %114 = vmatprep.subr.bf16.mxu0 0
    %115 = vmatpush1.bf16.msra.mxu0 0
    %116 = vmatprep.subr.bf16.mxu0 0
    %117 = vmatpush1.bf16.msra.mxu0 0
    %118 = vmatprep.subr.bf16.mxu0 0
    %119 = vmatpush1.bf16.msra.mxu0 0
    %120 = vmatprep.subr.bf16.mxu0 0
    %121 = vmatpush1.bf16.msra.mxu0 0
    %122 = vmatprep.mubr.bf16.mxu0 0
    %123 = vmatmul.mubr.bf16.gmra.mrb[0].mxu0 %v88
    %v124 = vpop.f32.mrb[0].mxu0
    %v125 = vadd.f32 %v59, %v124
    %v126 = vpop.f32.mrb[0].mxu0
    %v127 = vadd.f32 %v63, %v126
    %v128 = vpop.f32.mrb[0].mxu0
    %v129 = vpop.f32.mrb[0].mxu0
    %130 = vdwg.mxu0
    %v131 = vmax.f32 %v125, 0.0
    %v132 = vmax.f32 %v127, 0.0
    %v133 = vpack.c.bf16 %v131, %v131
    %v134 = vpack.c.bf16 %v132, %v132
    %v135 = vld [vmem:[#allocation2] sm:$0xff]
    %v136 = vld [vmem:[#allocation2 + $0x8] sm:$0xff]
    %v137 = vld [vmem:[#allocation2 + $0x10] sm:$0xff]
    %v138 = vld [vmem:[#allocation2 + $0x18] sm:$0xff]
    %v139 = vld [vmem:[#allocation2 + $0x20] sm:$0xff]
    %v140 = vld [vmem:[#allocation2 + $0x28] sm:$0xff]
    %v141 = vld [vmem:[#allocation2 + $0x30] sm:$0xff]
    %v142 = vld [vmem:[#allocation2 + $0x38] sm:$0xff]
    %v143 = vld [vmem:[#allocation2 + $0x40] sm:$0xff]
    %v144 = vld [vmem:[#allocation2 + $0x48] sm:$0xff]
    %v145 = vld [vmem:[#allocation2 + $0x50] sm:$0xff]
    %v146 = vld [vmem:[#allocation2 + $0x58] sm:$0xff]
    %v147 = vld [vmem:[#allocation2 + $0x60] sm:$0xff]
    %v148 = vld [vmem:[#allocation2 + $0x68] sm:$0xff]
    %v149 = vld [vmem:[#allocation2 + $0x70] sm:$0xff]
    %v150 = vld [vmem:[#allocation2 + $0x78] sm:$0xff]
    %v151 = vld [vmem:[#allocation2 + $0x80] sm:$0xff]
    %v152 = vld [vmem:[#allocation2 + $0x88] sm:$0xff]
    %v153 = vld [vmem:[#allocation2 + $0x90] sm:$0xff]
    %v154 = vld [vmem:[#allocation2 + $0x98] sm:$0xff]
    %v155 = vld [vmem:[#allocation2 + $0xa0] sm:$0xff]
    %v156 = vld [vmem:[#allocation2 + $0xa8] sm:$0xff]
    %v157 = vld [vmem:[#allocation2 + $0xb0] sm:$0xff]
    %v158 = vld [vmem:[#allocation2 + $0xb8] sm:$0xff]
    %v159 = vld [vmem:[#allocation2 + $0xc0] sm:$0xff]
    %v160 = vld [vmem:[#allocation2 + $0xc8] sm:$0xff]
    %v161 = vld [vmem:[#allocation2 + $0xd0] sm:$0xff]
    %v162 = vld [vmem:[#allocation2 + $0xd8] sm:$0xff]
    %v163 = vld [vmem:[#allocation2 + $0xe0] sm:$0xff]
    %v164 = vld [vmem:[#allocation2 + $0xe8] sm:$0xff]
    %v165 = vld [vmem:[#allocation2 + $0xf0] sm:$0xff]
    %v166 = vld [vmem:[#allocation2 + $0xf8] sm:$0xff]
    %v167 = vld [vmem:[%s4] sm:$0x3]
    %v169 = vlaneseq
    %v170 = vshrl.u32 %v169, 7
    %v171 = vsub.s32 0, %v170
    %v172 = vrot.slane %v167, %v171
    %v173 = vlaneseq
    %v174 = vshrl.u32 %v173, 7
    %v175 = vsub.s32 1, %v174
    %v176 = vrot.slane %v167, %v175
    %v211 = vunpack.c.l.b16 %v135
    %v212 = vunpack.c.h.b16 %v135
    %v213 = vunpack.c.l.b16 %v136
    %v214 = vunpack.c.h.b16 %v136
    %v215 = vunpack.c.l.b16 %v137
    %v216 = vunpack.c.h.b16 %v137
    %v217 = vunpack.c.l.b16 %v138
    %v218 = vunpack.c.h.b16 %v138
    %v219 = vunpack.c.l.b16 %v139
    %v220 = vunpack.c.h.b16 %v139
    %v221 = vunpack.c.l.b16 %v140
    %v222 = vunpack.c.h.b16 %v140
    %v223 = vunpack.c.l.b16 %v141
    %v224 = vunpack.c.h.b16 %v141
    %v225 = vunpack.c.l.b16 %v142
    %v226 = vunpack.c.h.b16 %v142
    %v227 = vunpack.c.l.b16 %v143
    %v228 = vunpack.c.h.b16 %v143
    %v229 = vunpack.c.l.b16 %v144
    %v230 = vunpack.c.h.b16 %v144
    %v231 = vunpack.c.l.b16 %v145
    %v232 = vunpack.c.h.b16 %v145
    %v233 = vunpack.c.l.b16 %v146
    %v234 = vunpack.c.h.b16 %v146
    %v235 = vunpack.c.l.b16 %v147
    %v236 = vunpack.c.h.b16 %v147
    %v237 = vunpack.c.l.b16 %v148
    %v238 = vunpack.c.h.b16 %v148
    %v239 = vunpack.c.l.b16 %v149
    %v240 = vunpack.c.h.b16 %v149
    %v241 = vunpack.c.l.b16 %v150
    %v242 = vunpack.c.h.b16 %v150
    %v243 = vunpack.c.l.b16 %v151
    %v244 = vunpack.c.h.b16 %v151
    %v245 = vunpack.c.l.b16 %v152
    %v246 = vunpack.c.h.b16 %v152
    %v247 = vunpack.c.l.b16 %v153
    %v248 = vunpack.c.h.b16 %v153
    %v249 = vunpack.c.l.b16 %v154
    %v250 = vunpack.c.h.b16 %v154
    %v251 = vunpack.c.l.b16 %v155
    %v252 = vunpack.c.h.b16 %v155
    %v253 = vunpack.c.l.b16 %v156
    %v254 = vunpack.c.h.b16 %v156
    %v255 = vunpack.c.l.b16 %v157
    %v256 = vunpack.c.h.b16 %v157
    %v257 = vunpack.c.l.b16 %v158
    %v258 = vunpack.c.h.b16 %v158
    %v259 = vunpack.c.l.b16 %v159
    %v260 = vunpack.c.h.b16 %v159
    %v261 = vunpack.c.l.b16 %v160
    %v262 = vunpack.c.h.b16 %v160
    %v263 = vunpack.c.l.b16 %v161
    %v264 = vunpack.c.h.b16 %v161
    %v265 = vunpack.c.l.b16 %v162
    %v266 = vunpack.c.h.b16 %v162
    %v267 = vunpack.c.l.b16 %v163
    %v268 = vunpack.c.h.b16 %v163
    %v269 = vunpack.c.l.b16 %v164
    %v270 = vunpack.c.h.b16 %v164
    %v271 = vunpack.c.l.b16 %v165
    %v272 = vunpack.c.h.b16 %v165
    %v273 = vunpack.c.l.b16 %v166
    %v274 = vunpack.c.h.b16 %v166
    %v275 = vpack.c.b16 %v213, %v211
    %v276 = vpack.c.b16 %v214, %v212
    %v277 = vpack.c.b16 %v217, %v215
    %v278 = vpack.c.b16 %v218, %v216
    %v279 = vpack.c.b16 %v221, %v219
    %v280 = vpack.c.b16 %v222, %v220
    %v281 = vpack.c.b16 %v225, %v223
    %v282 = vpack.c.b16 %v226, %v224
    %v283 = vpack.c.b16 %v229, %v227
    %v284 = vpack.c.b16 %v230, %v228
    %v285 = vpack.c.b16 %v233, %v231
    %v286 = vpack.c.b16 %v234, %v232
    %v287 = vpack.c.b16 %v237, %v235
    %v288 = vpack.c.b16 %v238, %v236
    %v289 = vpack.c.b16 %v241, %v239
    %v290 = vpack.c.b16 %v242, %v240
    %v291 = vpack.c.b16 %v245, %v243
    %v292 = vpack.c.b16 %v246, %v244
    %v293 = vpack.c.b16 %v249, %v247
    %v294 = vpack.c.b16 %v250, %v248
    %v295 = vpack.c.b16 %v253, %v251
    %v296 = vpack.c.b16 %v254, %v252
    %v297 = vpack.c.b16 %v257, %v255
    %v298 = vpack.c.b16 %v258, %v256
    %v299 = vpack.c.b16 %v261, %v259
    %v300 = vpack.c.b16 %v262, %v260
    %v301 = vpack.c.b16 %v265, %v263
    %v302 = vpack.c.b16 %v266, %v264
    %v303 = vpack.c.b16 %v269, %v267
    %v304 = vpack.c.b16 %v270, %v268
    %v305 = vpack.c.b16 %v273, %v271
    %v306 = vpack.c.b16 %v274, %v272
    %339 = vmatprep.subr.bf16.mxu0 %v276
    %340 = vmatpush1.bf16.msra.mxu0 %v275
    %341 = vmatprep.subr.bf16.mxu0 %v278
    %342 = vmatpush1.bf16.msra.mxu0 %v277
    %343 = vmatprep.subr.bf16.mxu0 %v280
    %344 = vmatpush1.bf16.msra.mxu0 %v279
    %345 = vmatprep.subr.bf16.mxu0 %v282
    %346 = vmatpush1.bf16.msra.mxu0 %v281
    %347 = vmatprep.subr.bf16.mxu0 %v284
    %348 = vmatpush1.bf16.msra.mxu0 %v283
    %349 = vmatprep.subr.bf16.mxu0 %v286
    %350 = vmatpush1.bf16.msra.mxu0 %v285
    %351 = vmatprep.subr.bf16.mxu0 %v288
    %352 = vmatpush1.bf16.msra.mxu0 %v287
    %353 = vmatprep.subr.bf16.mxu0 %v290
    %354 = vmatpush1.bf16.msra.mxu0 %v289
    %355 = vmatprep.subr.bf16.mxu0 %v292
    %356 = vmatpush1.bf16.msra.mxu0 %v291
    %357 = vmatprep.subr.bf16.mxu0 %v294
    %358 = vmatpush1.bf16.msra.mxu0 %v293
    %359 = vmatprep.subr.bf16.mxu0 %v296
    %360 = vmatpush1.bf16.msra.mxu0 %v295
    %361 = vmatprep.subr.bf16.mxu0 %v298
    %362 = vmatpush1.bf16.msra.mxu0 %v297
    %363 = vmatprep.subr.bf16.mxu0 %v300
    %364 = vmatpush1.bf16.msra.mxu0 %v299
    %365 = vmatprep.subr.bf16.mxu0 %v302
    %366 = vmatpush1.bf16.msra.mxu0 %v301
    %367 = vmatprep.subr.bf16.mxu0 %v304
    %368 = vmatpush1.bf16.msra.mxu0 %v303
    %369 = vmatprep.subr.bf16.mxu0 %v306
    %370 = vmatpush1.bf16.msra.mxu0 %v305
    %371 = vmatprep.mubr.bf16.mxu0 %v134
    %372 = vmatmul.mubr.bf16.gmra.mrb[0].mxu0 %v133
    %v373 = vpop.f32.mrb[0].mxu0
    %v374 = vadd.f32 %v172, %v373
    %v375 = vpop.f32.mrb[0].mxu0
    %v376 = vadd.f32 %v176, %v375
    %v377 = vpop.f32.mrb[0].mxu0
    %v378 = vpop.f32.mrb[0].mxu0
    %379 = vdwg.mxu0
    %v380 = vmax.f32 %v374, 0.0
    %v381 = vmax.f32 %v376, 0.0
    %v382 = vpack.c.bf16 %v380, %v380
    %v383 = vpack.c.bf16 %v381, %v381
    %v384 = vld [vmem:[%s5] sm:$0xf]
    %v385 = vld [vmem:[%s5 + $0x4] sm:$0xf]
    %v386 = vld [vmem:[%s5 + $0x8] sm:$0xf]
    %v387 = vld [vmem:[%s5 + $0xc] sm:$0xf]
    %v388 = vld [vmem:[%s5 + $0x10] sm:$0xf]
    %v389 = vld [vmem:[%s5 + $0x14] sm:$0xf]
    %v390 = vld [vmem:[%s5 + $0x18] sm:$0xf]
    %v391 = vld [vmem:[%s5 + $0x1c] sm:$0xf]
    %v392 = vld [vmem:[%s5 + $0x20] sm:$0xf]
    %v393 = vld [vmem:[%s5 + $0x24] sm:$0xf]
    %v394 = vld [vmem:[%s5 + $0x28] sm:$0xf]
    %v395 = vld [vmem:[%s5 + $0x2c] sm:$0xf]
    %v396 = vld [vmem:[%s5 + $0x30] sm:$0xf]
    %v397 = vld [vmem:[%s5 + $0x34] sm:$0xf]
    %v398 = vld [vmem:[%s5 + $0x38] sm:$0xf]
    %v399 = vld [vmem:[%s5 + $0x3c] sm:$0xf]
    %v400 = vld [vmem:[%s5 + $0x40] sm:$0xf]
    %v401 = vld [vmem:[%s5 + $0x44] sm:$0xf]
    %v402 = vld [vmem:[%s5 + $0x48] sm:$0xf]
    %v403 = vld [vmem:[%s5 + $0x4c] sm:$0xf]
    %v404 = vld [vmem:[%s5 + $0x50] sm:$0xf]
    %v405 = vld [vmem:[%s5 + $0x54] sm:$0xf]
    %v406 = vld [vmem:[%s5 + $0x58] sm:$0xf]
    %v407 = vld [vmem:[%s5 + $0x5c] sm:$0xf]
    %v408 = vld [vmem:[%s5 + $0x60] sm:$0xf]
    %v409 = vld [vmem:[%s5 + $0x64] sm:$0xf]
    %v410 = vld [vmem:[%s5 + $0x68] sm:$0xf]
    %v411 = vld [vmem:[%s5 + $0x6c] sm:$0xf]
    %v412 = vld [vmem:[%s5 + $0x70] sm:$0xf]
    %v413 = vld [vmem:[%s5 + $0x74] sm:$0xf]
    %v414 = vld [vmem:[%s5 + $0x78] sm:$0xf]
    %v415 = vld [vmem:[%s5 + $0x7c] sm:$0xf]
    %v416 = vld [vmem:[%s6] sm:$0x1]
    %v418 = vlaneseq
    %v419 = vshrl.u32 %v418, 7
    %v420 = vsub.s32 0, %v419
    %v421 = vrot.slane %v416, %v420
    %v455 = vunpack.c.l.b16 %v384
    %v456 = vunpack.c.l.b16 %v385
    %v457 = vunpack.c.l.b16 %v386
    %v458 = vunpack.c.l.b16 %v387
    %v459 = vunpack.c.l.b16 %v388
    %v460 = vunpack.c.l.b16 %v389
    %v461 = vunpack.c.l.b16 %v390
    %v462 = vunpack.c.l.b16 %v391
    %v463 = vunpack.c.l.b16 %v392
    %v464 = vunpack.c.l.b16 %v393
    %v465 = vunpack.c.l.b16 %v394
    %v466 = vunpack.c.l.b16 %v395
    %v467 = vunpack.c.l.b16 %v396
    %v468 = vunpack.c.l.b16 %v397
    %v469 = vunpack.c.l.b16 %v398
    %v470 = vunpack.c.l.b16 %v399
    %v471 = vunpack.c.l.b16 %v400
    %v472 = vunpack.c.l.b16 %v401
    %v473 = vunpack.c.l.b16 %v402
    %v474 = vunpack.c.l.b16 %v403
    %v475 = vunpack.c.l.b16 %v404
    %v476 = vunpack.c.l.b16 %v405
    %v477 = vunpack.c.l.b16 %v406
    %v478 = vunpack.c.l.b16 %v407
    %v479 = vunpack.c.l.b16 %v408
    %v480 = vunpack.c.l.b16 %v409
    %v481 = vunpack.c.l.b16 %v410
    %v482 = vunpack.c.l.b16 %v411
    %v483 = vunpack.c.l.b16 %v412
    %v484 = vunpack.c.l.b16 %v413
    %v485 = vunpack.c.l.b16 %v414
    %v486 = vunpack.c.l.b16 %v415
    %v487 = vpack.c.b16 %v456, %v455
    %v488 = vpack.c.b16 %v458, %v457
    %v489 = vpack.c.b16 %v460, %v459
    %v490 = vpack.c.b16 %v462, %v461
    %v491 = vpack.c.b16 %v464, %v463
    %v492 = vpack.c.b16 %v466, %v465
    %v493 = vpack.c.b16 %v468, %v467
    %v494 = vpack.c.b16 %v470, %v469
    %v495 = vpack.c.b16 %v472, %v471
    %v496 = vpack.c.b16 %v474, %v473
    %v497 = vpack.c.b16 %v476, %v475
    %v498 = vpack.c.b16 %v478, %v477
    %v499 = vpack.c.b16 %v480, %v479
    %v500 = vpack.c.b16 %v482, %v481
    %v501 = vpack.c.b16 %v484, %v483
    %v502 = vpack.c.b16 %v486, %v485
    %519 = vmatprep.subr.bf16.mxu0 0
    %520 = vmatpush1.bf16.msra.mxu0 %v487
    %521 = vmatprep.subr.bf16.mxu0 0
    %522 = vmatpush1.bf16.msra.mxu0 %v488
    %523 = vmatprep.subr.bf16.mxu0 0
    %524 = vmatpush1.bf16.msra.mxu0 %v489
    %525 = vmatprep.subr.bf16.mxu0 0
    %526 = vmatpush1.bf16.msra.mxu0 %v490
    %527 = vmatprep.subr.bf16.mxu0 0
    %528 = vmatpush1.bf16.msra.mxu0 %v491
    %529 = vmatprep.subr.bf16.mxu0 0
    %530 = vmatpush1.bf16.msra.mxu0 %v492
    %531 = vmatprep.subr.bf16.mxu0 0
    %532 = vmatpush1.bf16.msra.mxu0 %v493
    %533 = vmatprep.subr.bf16.mxu0 0
    %534 = vmatpush1.bf16.msra.mxu0 %v494
    %535 = vmatprep.subr.bf16.mxu0 0
    %536 = vmatpush1.bf16.msra.mxu0 %v495
    %537 = vmatprep.subr.bf16.mxu0 0
    %538 = vmatpush1.bf16.msra.mxu0 %v496
    %539 = vmatprep.subr.bf16.mxu0 0
    %540 = vmatpush1.bf16.msra.mxu0 %v497
    %541 = vmatprep.subr.bf16.mxu0 0
    %542 = vmatpush1.bf16.msra.mxu0 %v498
    %543 = vmatprep.subr.bf16.mxu0 0
    %544 = vmatpush1.bf16.msra.mxu0 %v499
    %545 = vmatprep.subr.bf16.mxu0 0
    %546 = vmatpush1.bf16.msra.mxu0 %v500
    %547 = vmatprep.subr.bf16.mxu0 0
    %548 = vmatpush1.bf16.msra.mxu0 %v501
    %549 = vmatprep.subr.bf16.mxu0 0
    %550 = vmatpush1.bf16.msra.mxu0 %v502
    %551 = vmatprep.mubr.bf16.mxu0 %v383
    %552 = vmatmul.mubr.bf16.gmra.mrb[0].mxu0 %v382
    %v553 = vpop.f32.mrb[0].mxu0
    %v554 = vadd.f32 %v421, %v553
    %v555 = vpop.f32.mrb[0].mxu0
    %v556 = vpop.f32.mrb[0].mxu0
    %v557 = vpop.f32.mrb[0].mxu0
    %558 = vdwg.mxu0
    %v559 = vmax.f32 %v554, 0.0
    %v560 = vpack.c.bf16 %v559, %v559
    %v561 = vld [vmem:[%s7] sm:$0xf]
    %v562 = vld [vmem:[%s7 + $0x4] sm:$0xf]
    %v563 = vld [vmem:[%s7 + $0x8] sm:$0xf]
    %v564 = vld [vmem:[%s7 + $0xc] sm:$0xf]
    %v565 = vld [vmem:[%s7 + $0x10] sm:$0xf]
    %v566 = vld [vmem:[%s7 + $0x14] sm:$0xf]
    %v567 = vld [vmem:[%s7 + $0x18] sm:$0xf]
    %v568 = vld [vmem:[%s7 + $0x1c] sm:$0xf]
    %v569 = vld [vmem:[%s8] sm:$0x1]
    %v571 = vlaneseq
    %v572 = vshrl.u32 %v571, 7
    %v573 = vsub.s32 0, %v572
    %v574 = vrot.slane %v569, %v573
    %v584 = vunpack.c.l.b16 %v561
    %v585 = vunpack.c.l.b16 %v562
    %v586 = vunpack.c.l.b16 %v563
    %v587 = vunpack.c.l.b16 %v564
    %v588 = vunpack.c.l.b16 %v565
    %v589 = vunpack.c.l.b16 %v566
    %v590 = vunpack.c.l.b16 %v567
    %v591 = vunpack.c.l.b16 %v568
    %v592 = vpack.c.b16 %v585, %v584
    %v593 = vpack.c.b16 %v587, %v586
    %v594 = vpack.c.b16 %v589, %v588
    %v595 = vpack.c.b16 %v591, %v590
    %vm600 = vcmask 523264
    %v602 = vsel %vm600, %v560, 0
    %604 = vmatprep.subr.bf16.mxu0 0
    %605 = vmatpush1.bf16.msra.mxu0 %v592
    %606 = vmatprep.subr.bf16.mxu0 0
    %607 = vmatpush1.bf16.msra.mxu0 %v593
    %608 = vmatprep.subr.bf16.mxu0 0
    %609 = vmatpush1.bf16.msra.mxu0 %v594
    %610 = vmatprep.subr.bf16.mxu0 0
    %611 = vmatpush1.bf16.msra.mxu0 %v595
    %612 = vmatprep.subr.bf16.mxu0 0
    %613 = vmatpush1.bf16.msra.mxu0 0
    %614 = vmatprep.subr.bf16.mxu0 0
    %615 = vmatpush1.bf16.msra.mxu0 0
    %616 = vmatprep.subr.bf16.mxu0 0
    %617 = vmatpush1.bf16.msra.mxu0 0
    %618 = vmatprep.subr.bf16.mxu0 0
    %619 = vmatpush1.bf16.msra.mxu0 0
    %620 = vmatprep.subr.bf16.mxu0 0
    %621 = vmatpush1.bf16.msra.mxu0 0
    %622 = vmatprep.subr.bf16.mxu0 0
    %623 = vmatpush1.bf16.msra.mxu0 0
    %624 = vmatprep.subr.bf16.mxu0 0
    %625 = vmatpush1.bf16.msra.mxu0 0
    %626 = vmatprep.subr.bf16.mxu0 0
    %627 = vmatpush1.bf16.msra.mxu0 0
    %628 = vmatprep.subr.bf16.mxu0 0
    %629 = vmatpush1.bf16.msra.mxu0 0
    %630 = vmatprep.subr.bf16.mxu0 0
    %631 = vmatpush1.bf16.msra.mxu0 0
    %632 = vmatprep.subr.bf16.mxu0 0
    %633 = vmatpush1.bf16.msra.mxu0 0
    %634 = vmatprep.subr.bf16.mxu0 0
    %635 = vmatpush1.bf16.msra.mxu0 0
    %636 = vmatprep.mubr.bf16.mxu0 0
    %637 = vmatmul.mubr.bf16.gmra.mrb[0].mxu0 %v602
    %v638 = vpop.f32.mrb[0].mxu0
    %v639 = vadd.f32 %v574, %v638
    %v640 = vpop.f32.mrb[0].mxu0
    %v641 = vpop.f32.mrb[0].mxu0
    %v642 = vpop.f32.mrb[0].mxu0
    %643 = vdwg.mxu0
    %vm644 = vcmask 64512
    %645 = vst.msk [vmem:[#allocation5] sm:$0xff] %vm644, %v639
    // Predicated region
    $region42: #{tpu_custom_call.1} parent=1 // pred_check
      _
    $region43: #{tpu_custom_call.1} parent=1 // pred_check_branch
      %647 = sbr.rel (0) target = $region45
    $region44: #{tpu_custom_call.1} parent=1 // pred_region
      %s649 = ssub.s32 128, 32
      %650 = vsyncadd [#allocation4], %s649
      %s651 = sshll.u32 [#allocation5], 4
      %s652 = int_to_ptr.vmem [resolvable:$true] %s651
      %657 = dma.vmem_to_hbm [thread:$0]  %s652, 32, %s9, [#allocation4], 32, 32, 2
    $region45: #{tpu_custom_call.1} parent=1 // pred_fallthru
      _
    // Predicated region
    $region46: #{tpu_custom_call.1} parent=1 // pred_check
      _
    $region47: #{tpu_custom_call.1} parent=1 // pred_check_branch
      %659 = sbr.rel (0) target = $region49
    $region48: #{tpu_custom_call.1} parent=1 // pred_region
      %660 = dma.done [#allocation4], 128
    $region49: #{tpu_custom_call.1} parent=1 // pred_fallthru
      _
    %661 = vsyncpa [#allocation3], 1
    %662 = vsyncpa [#allocation4], 1

// kernel: tpu_custom_call.1
$region0: #{tpu_custom_call.1}
  #allocation0 [shape = 'u32[]', space=smem, size = 0x4, offset = 0x4, fixed_abs, tag = 'smem constant byte address 0x4 - core index']
  #allocation1 [shape = 'u32[144,128]{1,0:T(1,128)}', space=vmem, size = 0x12000, scoped, tag = 'internal scratch']
  %s0 = inlined_call_operand.vmem [shape: f32[2,32], index: 0, kind: input, shape index: {}]
  %s1 = inlined_call_operand.vmem [shape: bf16[32,256], index: 1, kind: input, shape index: {}]
  %s2 = inlined_call_operand.vmem [shape: f32[1,256], index: 2, kind: input, shape index: {}]
  %s3 = inlined_call_operand.hbm [shape: bf16[256,256], index: 3, kind: input, shape index: {}]
  %s4 = inlined_call_operand.vmem [shape: f32[1,256], index: 4, kind: input, shape index: {}]
  %s5 = inlined_call_operand.vmem [shape: bf16[256,64], index: 5, kind: input, shape index: {}]
  %s6 = inlined_call_operand.vmem [shape: f32[1,64], index: 6, kind: input, shape index: {}]
  %s7 = inlined_call_operand.vmem [shape: bf16[64,8], index: 7, kind: input, shape index: {}]
  %s8 = inlined_call_operand.vmem [shape: f32[1,8], index: 8, kind: input, shape index: {}]
  %s9 = inlined_call_operand.hbm [shape: f32[2,8], index: 9, kind: output, shape index: {}]
  %s10 = sld [smem:[#allocation0]]
  $region50: #{tpu_custom_call.1} parent=0
    _
  %s12 = ssub.s32 1, %s10
  %s13 = scalar_select 0, %s12, %s10
  $region1: #{tpu_custom_call.1} parent=0
    #allocation2 [shape = 'u8[131072]{0}', space=vmem, size = 0x20000, scoped, tag = 'input window, operand 3, single buffered']
    #allocation3 [shape = 's32[1]{0}', space=sflag, size = 0x4, scoped, tag = 'scoped memory for tpu_custom_call.1']
    #allocation4 [shape = 's32[1]{0}', space=sflag, size = 0x4, scoped, tag = 'scoped memory for tpu_custom_call.1']
    #allocation5 [shape = 'u8[4096]{0}', space=vmem, size = 0x1000, scoped, tag = 'output window, operand 0, single buffered']
    %14 = vsyncpa [#allocation3], 0
    %15 = vsyncpa [#allocation4], 0
    // Predicated region
    $region2: #{tpu_custom_call.1} parent=1 // pred_check
      _
    $region3: #{tpu_custom_call.1} parent=1 // pred_check_branch
      %17 = sbr.rel (0) target = $region5
    $region4: #{tpu_custom_call.1} parent=1 // pred_region
      _
    $region5: #{tpu_custom_call.1} parent=1 // pred_fallthru
      _
    // Predicated region
    $region6: #{tpu_custom_call.1} parent=1 // pred_check
      _
    $region7: #{tpu_custom_call.1} parent=1 // pred_check_branch
      %19 = sbr.rel (0) target = $region9
    $region8: #{tpu_custom_call.1} parent=1 // pred_region
      _
    $region9: #{tpu_custom_call.1} parent=1 // pred_fallthru
      _
    // Predicated region
    $region10: #{tpu_custom_call.1} parent=1 // pred_check
      _
    $region11: #{tpu_custom_call.1} parent=1 // pred_check_branch
      %21 = sbr.rel (0) target = $region13
    $region12: #{tpu_custom_call.1} parent=1 // pred_region
      _
    $region13: #{tpu_custom_call.1} parent=1 // pred_fallthru
      _
    // Predicated region
    $region14: #{tpu_custom_call.1} parent=1 // pred_check
      _
    $region15: #{tpu_custom_call.1} parent=1 // pred_check_branch
      %23 = sbr.rel (0) target = $region17
    $region16: #{tpu_custom_call.1} parent=1 // pred_region
      %s25 = ssub.s32 4096, 4096
      %26 = vsyncadd [#allocation3], %s25
      %s27 = sshll.u32 [#allocation2], 4
      %s28 = int_to_ptr.vmem [resolvable:$true] %s27
      %33 = dma.hbm_to_vmem [thread:$0]  %s3, 4096, %s28, [#allocation3], 128, 128, 8
    $region17: #{tpu_custom_call.1} parent=1 // pred_fallthru
      _
    // Predicated region
    $region18: #{tpu_custom_call.1} parent=1 // pred_check
      _
    $region19: #{tpu_custom_call.1} parent=1 // pred_check_branch
      %35 = sbr.rel (0) target = $region21
    $region20: #{tpu_custom_call.1} parent=1 // pred_region
      _
    $region21: #{tpu_custom_call.1} parent=1 // pred_fallthru
      _
    // Predicated region
    $region22: #{tpu_custom_call.1} parent=1 // pred_check
      _
    $region23: #{tpu_custom_call.1} parent=1 // pred_check_branch
      %37 = sbr.rel (0) target = $region25
    $region24: #{tpu_custom_call.1} parent=1 // pred_region
      _
    $region25: #{tpu_custom_call.1} parent=1 // pred_fallthru
      _
    // Predicated region
    $region26: #{tpu_custom_call.1} parent=1 // pred_check
      _
    $region27: #{tpu_custom_call.1} parent=1 // pred_check_branch
      %39 = sbr.rel (0) target = $region29
    $region28: #{tpu_custom_call.1} parent=1 // pred_region
      _
    $region29: #{tpu_custom_call.1} parent=1 // pred_fallthru
      _
    // Predicated region
    $region30: #{tpu_custom_call.1} parent=1 // pred_check
      _
    $region31: #{tpu_custom_call.1} parent=1 // pred_check_branch
      %41 = sbr.rel (0) target = $region33
    $region32: #{tpu_custom_call.1} parent=1 // pred_region
      _
    $region33: #{tpu_custom_call.1} parent=1 // pred_fallthru
      _
    // Predicated region
    $region34: #{tpu_custom_call.1} parent=1 // pred_check
      _
    $region35: #{tpu_custom_call.1} parent=1 // pred_check_branch
      %43 = sbr.rel (0) target = $region37
    $region36: #{tpu_custom_call.1} parent=1 // pred_region
      _
    $region37: #{tpu_custom_call.1} parent=1 // pred_fallthru
      _
    // Predicated region
    $region38: #{tpu_custom_call.1} parent=1 // pred_check
      _
    $region39: #{tpu_custom_call.1} parent=1 // pred_check_branch
      %45 = sbr.rel (0) target = $region41
    $region40: #{tpu_custom_call.1} parent=1 // pred_region
      %46 = dma.done [#allocation3], 4096
    $region41: #{tpu_custom_call.1} parent=1 // pred_fallthru
      _
    %v48 = vld [vmem:[%s0] sm:$0xff]
    %v49 = vpack.c.bf16 %v48, %v48
    %v50 = vld [vmem:[%s1] sm:$0xff]
    %v51 = vld [vmem:[%s1 + $0x8] sm:$0xff]
    %v52 = vld [vmem:[%s1 + $0x10] sm:$0xff]
    %v53 = vld [vmem:[%s1 + $0x18] sm:$0xff]
    %v54 = vld [vmem:[%s2] sm:$0x3]
    %v56 = vlaneseq
    %v57 = vshrl.u32 %v56, 7
    %v58 = vsub.s32 0, %v57
    %v59 = vrot.slane %v54, %v58
    %v60 = vlaneseq
    %v61 = vshrl.u32 %v60, 7
    %v62 = vsub.s32 1, %v61
    %v63 = vrot.slane %v54, %v62
    %v70 = vunpack.c.l.b16 %v50
    %v71 = vunpack.c.h.b16 %v50
    %v72 = vunpack.c.l.b16 %v51
    %v73 = vunpack.c.h.b16 %v51
    %v74 = vunpack.c.l.b16 %v52
    %v75 = vunpack.c.h.b16 %v52
    %v76 = vunpack.c.l.b16 %v53
    %v77 = vunpack.c.h.b16 %v53
    %v78 = vpack.c.b16 %v72, %v70
    %v79 = vpack.c.b16 %v73, %v71
    %v80 = vpack.c.b16 %v76, %v74
    %v81 = vpack.c.b16 %v77, %v75
    %vm86 = vcmask 261120
    %v88 = vsel %vm86, %v49, 0
    %90 = vmatprep.subr.bf16.mxu0 %v79
    %91 = vmatpush1.bf16.msra.mxu0 %v78
    %92 = vmatprep.subr.bf16.mxu0 %v81
    %93 = vmatpush1.bf16.msra.mxu0 %v80
    %94 = vmatprep.subr.bf16.mxu0 0
    %95 = vmatpush1.bf16.msra.mxu0 0
    %96 = vmatprep.subr.bf16.mxu0 0
    %97 = vmatpush1.bf16.msra.mxu0 0
    %98 = vmatprep.subr.bf16.mxu0 0
    %99 = vmatpush1.bf16.msra.mxu0 0
    %100 = vmatprep.subr.bf16.mxu0 0
    %101 = vmatpush1.bf16.msra.mxu0 0
    %102 = vmatprep.subr.bf16.mxu0 0
    %103 = vmatpush1.bf16.msra.mxu0 0
    %104 = vmatprep.subr.bf16.mxu0 0
    %105 = vmatpush1.bf16.msra.mxu0 0
    %106 = vmatprep.subr.bf16.mxu0 0
    %107 = vmatpush1.bf16.msra.mxu0 0
    %108 = vmatprep.subr.bf16.mxu0 0
    %109 = vmatpush1.bf16.msra.mxu0 0
    %110 = vmatprep.subr.bf16.mxu0 0
    %111 = vmatpush1.bf16.msra.mxu0 0
    %112 = vmatprep.subr.bf16.mxu0 0
    %113 = vmatpush1.bf16.msra.mxu0 0
    %114 = vmatprep.subr.bf16.mxu0 0
    %115 = vmatpush1.bf16.msra.mxu0 0
    %116 = vmatprep.subr.bf16.mxu0 0
    %117 = vmatpush1.bf16.msra.mxu0 0
    %118 = vmatprep.subr.bf16.mxu0 0
    %119 = vmatpush1.bf16.msra.mxu0 0
    %120 = vmatprep.subr.bf16.mxu0 0
    %121 = vmatpush1.bf16.msra.mxu0 0
    %122 = vmatprep.mubr.bf16.mxu0 0
    %123 = vmatmul.mubr.bf16.gmra.mrb[0].mxu0 %v88
    %v124 = vpop.f32.mrb[0].mxu0
    %v125 = vadd.f32 %v59, %v124
    %v126 = vpop.f32.mrb[0].mxu0
    %v127 = vadd.f32 %v63, %v126
    %v128 = vpop.f32.mrb[0].mxu0
    %v129 = vpop.f32.mrb[0].mxu0
    %130 = vdwg.mxu0
    %v131 = vmax.f32 %v125, 0.0
    %v132 = vmax.f32 %v127, 0.0
    %v133 = vpack.c.bf16 %v131, %v131
    %v134 = vpack.c.bf16 %v132, %v132
    %v135 = vld [vmem:[#allocation2] sm:$0xff]
    %v136 = vld [vmem:[#allocation2 + $0x8] sm:$0xff]
    %v137 = vld [vmem:[#allocation2 + $0x10] sm:$0xff]
    %v138 = vld [vmem:[#allocation2 + $0x18] sm:$0xff]
    %v139 = vld [vmem:[#allocation2 + $0x20] sm:$0xff]
    %v140 = vld [vmem:[#allocation2 + $0x28] sm:$0xff]
    %v141 = vld [vmem:[#allocation2 + $0x30] sm:$0xff]
    %v142 = vld [vmem:[#allocation2 + $0x38] sm:$0xff]
    %v143 = vld [vmem:[#allocation2 + $0x40] sm:$0xff]
    %v144 = vld [vmem:[#allocation2 + $0x48] sm:$0xff]
    %v145 = vld [vmem:[#allocation2 + $0x50] sm:$0xff]
    %v146 = vld [vmem:[#allocation2 + $0x58] sm:$0xff]
    %v147 = vld [vmem:[#allocation2 + $0x60] sm:$0xff]
    %v148 = vld [vmem:[#allocation2 + $0x68] sm:$0xff]
    %v149 = vld [vmem:[#allocation2 + $0x70] sm:$0xff]
    %v150 = vld [vmem:[#allocation2 + $0x78] sm:$0xff]
    %v151 = vld [vmem:[#allocation2 + $0x80] sm:$0xff]
    %v152 = vld [vmem:[#allocation2 + $0x88] sm:$0xff]
    %v153 = vld [vmem:[#allocation2 + $0x90] sm:$0xff]
    %v154 = vld [vmem:[#allocation2 + $0x98] sm:$0xff]
    %v155 = vld [vmem:[#allocation2 + $0xa0] sm:$0xff]
    %v156 = vld [vmem:[#allocation2 + $0xa8] sm:$0xff]
    %v157 = vld [vmem:[#allocation2 + $0xb0] sm:$0xff]
    %v158 = vld [vmem:[#allocation2 + $0xb8] sm:$0xff]
    %v159 = vld [vmem:[#allocation2 + $0xc0] sm:$0xff]
    %v160 = vld [vmem:[#allocation2 + $0xc8] sm:$0xff]
    %v161 = vld [vmem:[#allocation2 + $0xd0] sm:$0xff]
    %v162 = vld [vmem:[#allocation2 + $0xd8] sm:$0xff]
    %v163 = vld [vmem:[#allocation2 + $0xe0] sm:$0xff]
    %v164 = vld [vmem:[#allocation2 + $0xe8] sm:$0xff]
    %v165 = vld [vmem:[#allocation2 + $0xf0] sm:$0xff]
    %v166 = vld [vmem:[#allocation2 + $0xf8] sm:$0xff]
    %v167 = vld [vmem:[%s4] sm:$0x3]
    %v169 = vlaneseq
    %v170 = vshrl.u32 %v169, 7
    %v171 = vsub.s32 0, %v170
    %v172 = vrot.slane %v167, %v171
    %v173 = vlaneseq
    %v174 = vshrl.u32 %v173, 7
    %v175 = vsub.s32 1, %v174
    %v176 = vrot.slane %v167, %v175
    %v211 = vunpack.c.l.b16 %v135
    %v212 = vunpack.c.h.b16 %v135
    %v213 = vunpack.c.l.b16 %v136
    %v214 = vunpack.c.h.b16 %v136
    %v215 = vunpack.c.l.b16 %v137
    %v216 = vunpack.c.h.b16 %v137
    %v217 = vunpack.c.l.b16 %v138
    %v218 = vunpack.c.h.b16 %v138
    %v219 = vunpack.c.l.b16 %v139
    %v220 = vunpack.c.h.b16 %v139
    %v221 = vunpack.c.l.b16 %v140
    %v222 = vunpack.c.h.b16 %v140
    %v223 = vunpack.c.l.b16 %v141
    %v224 = vunpack.c.h.b16 %v141
    %v225 = vunpack.c.l.b16 %v142
    %v226 = vunpack.c.h.b16 %v142
    %v227 = vunpack.c.l.b16 %v143
    %v228 = vunpack.c.h.b16 %v143
    %v229 = vunpack.c.l.b16 %v144
    %v230 = vunpack.c.h.b16 %v144
    %v231 = vunpack.c.l.b16 %v145
    %v232 = vunpack.c.h.b16 %v145
    %v233 = vunpack.c.l.b16 %v146
    %v234 = vunpack.c.h.b16 %v146
    %v235 = vunpack.c.l.b16 %v147
    %v236 = vunpack.c.h.b16 %v147
    %v237 = vunpack.c.l.b16 %v148
    %v238 = vunpack.c.h.b16 %v148
    %v239 = vunpack.c.l.b16 %v149
    %v240 = vunpack.c.h.b16 %v149
    %v241 = vunpack.c.l.b16 %v150
    %v242 = vunpack.c.h.b16 %v150
    %v243 = vunpack.c.l.b16 %v151
    %v244 = vunpack.c.h.b16 %v151
    %v245 = vunpack.c.l.b16 %v152
    %v246 = vunpack.c.h.b16 %v152
    %v247 = vunpack.c.l.b16 %v153
    %v248 = vunpack.c.h.b16 %v153
    %v249 = vunpack.c.l.b16 %v154
    %v250 = vunpack.c.h.b16 %v154
    %v251 = vunpack.c.l.b16 %v155
    %v252 = vunpack.c.h.b16 %v155
    %v253 = vunpack.c.l.b16 %v156
    %v254 = vunpack.c.h.b16 %v156
    %v255 = vunpack.c.l.b16 %v157
    %v256 = vunpack.c.h.b16 %v157
    %v257 = vunpack.c.l.b16 %v158
    %v258 = vunpack.c.h.b16 %v158
    %v259 = vunpack.c.l.b16 %v159
    %v260 = vunpack.c.h.b16 %v159
    %v261 = vunpack.c.l.b16 %v160
    %v262 = vunpack.c.h.b16 %v160
    %v263 = vunpack.c.l.b16 %v161
    %v264 = vunpack.c.h.b16 %v161
    %v265 = vunpack.c.l.b16 %v162
    %v266 = vunpack.c.h.b16 %v162
    %v267 = vunpack.c.l.b16 %v163
    %v268 = vunpack.c.h.b16 %v163
    %v269 = vunpack.c.l.b16 %v164
    %v270 = vunpack.c.h.b16 %v164
    %v271 = vunpack.c.l.b16 %v165
    %v272 = vunpack.c.h.b16 %v165
    %v273 = vunpack.c.l.b16 %v166
    %v274 = vunpack.c.h.b16 %v166
    %v275 = vpack.c.b16 %v213, %v211
    %v276 = vpack.c.b16 %v214, %v212
    %v277 = vpack.c.b16 %v217, %v215
    %v278 = vpack.c.b16 %v218, %v216
    %v279 = vpack.c.b16 %v221, %v219
    %v280 = vpack.c.b16 %v222, %v220
    %v281 = vpack.c.b16 %v225, %v223
    %v282 = vpack.c.b16 %v226, %v224
    %v283 = vpack.c.b16 %v229, %v227
    %v284 = vpack.c.b16 %v230, %v228
    %v285 = vpack.c.b16 %v233, %v231
    %v286 = vpack.c.b16 %v234, %v232
    %v287 = vpack.c.b16 %v237, %v235
    %v288 = vpack.c.b16 %v238, %v236
    %v289 = vpack.c.b16 %v241, %v239
    %v290 = vpack.c.b16 %v242, %v240
    %v291 = vpack.c.b16 %v245, %v243
    %v292 = vpack.c.b16 %v246, %v244
    %v293 = vpack.c.b16 %v249, %v247
    %v294 = vpack.c.b16 %v250, %v248
    %v295 = vpack.c.b16 %v253, %v251
    %v296 = vpack.c.b16 %v254, %v252
    %v297 = vpack.c.b16 %v257, %v255
    %v298 = vpack.c.b16 %v258, %v256
    %v299 = vpack.c.b16 %v261, %v259
    %v300 = vpack.c.b16 %v262, %v260
    %v301 = vpack.c.b16 %v265, %v263
    %v302 = vpack.c.b16 %v266, %v264
    %v303 = vpack.c.b16 %v269, %v267
    %v304 = vpack.c.b16 %v270, %v268
    %v305 = vpack.c.b16 %v273, %v271
    %v306 = vpack.c.b16 %v274, %v272
    %339 = vmatprep.subr.bf16.mxu0 %v276
    %340 = vmatpush1.bf16.msra.mxu0 %v275
    %341 = vmatprep.subr.bf16.mxu0 %v278
    %342 = vmatpush1.bf16.msra.mxu0 %v277
    %343 = vmatprep.subr.bf16.mxu0 %v280
    %344 = vmatpush1.bf16.msra.mxu0 %v279
    %345 = vmatprep.subr.bf16.mxu0 %v282
    %346 = vmatpush1.bf16.msra.mxu0 %v281
    %347 = vmatprep.subr.bf16.mxu0 %v284
    %348 = vmatpush1.bf16.msra.mxu0 %v283
    %349 = vmatprep.subr.bf16.mxu0 %v286
    %350 = vmatpush1.bf16.msra.mxu0 %v285
    %351 = vmatprep.subr.bf16.mxu0 %v288
    %352 = vmatpush1.bf16.msra.mxu0 %v287
    %353 = vmatprep.subr.bf16.mxu0 %v290
    %354 = vmatpush1.bf16.msra.mxu0 %v289
    %355 = vmatprep.subr.bf16.mxu0 %v292
    %356 = vmatpush1.bf16.msra.mxu0 %v291
    %357 = vmatprep.subr.bf16.mxu0 %v294
    %358 = vmatpush1.bf16.msra.mxu0 %v293
    %359 = vmatprep.subr.bf16.mxu0 %v296
    %360 = vmatpush1.bf16.msra.mxu0 %v295
    %361 = vmatprep.subr.bf16.mxu0 %v298
    %362 = vmatpush1.bf16.msra.mxu0 %v297
    %363 = vmatprep.subr.bf16.mxu0 %v300
    %364 = vmatpush1.bf16.msra.mxu0 %v299
    %365 = vmatprep.subr.bf16.mxu0 %v302
    %366 = vmatpush1.bf16.msra.mxu0 %v301
    %367 = vmatprep.subr.bf16.mxu0 %v304
    %368 = vmatpush1.bf16.msra.mxu0 %v303
    %369 = vmatprep.subr.bf16.mxu0 %v306
    %370 = vmatpush1.bf16.msra.mxu0 %v305
    %371 = vmatprep.mubr.bf16.mxu0 %v134
    %372 = vmatmul.mubr.bf16.gmra.mrb[0].mxu0 %v133
    %v373 = vpop.f32.mrb[0].mxu0
    %v374 = vadd.f32 %v172, %v373
    %v375 = vpop.f32.mrb[0].mxu0
    %v376 = vadd.f32 %v176, %v375
    %v377 = vpop.f32.mrb[0].mxu0
    %v378 = vpop.f32.mrb[0].mxu0
    %379 = vdwg.mxu0
    %v380 = vmax.f32 %v374, 0.0
    %v381 = vmax.f32 %v376, 0.0
    %v382 = vpack.c.bf16 %v380, %v380
    %v383 = vpack.c.bf16 %v381, %v381
    %v384 = vld [vmem:[%s5] sm:$0xf]
    %v385 = vld [vmem:[%s5 + $0x4] sm:$0xf]
    %v386 = vld [vmem:[%s5 + $0x8] sm:$0xf]
    %v387 = vld [vmem:[%s5 + $0xc] sm:$0xf]
    %v388 = vld [vmem:[%s5 + $0x10] sm:$0xf]
    %v389 = vld [vmem:[%s5 + $0x14] sm:$0xf]
    %v390 = vld [vmem:[%s5 + $0x18] sm:$0xf]
    %v391 = vld [vmem:[%s5 + $0x1c] sm:$0xf]
    %v392 = vld [vmem:[%s5 + $0x20] sm:$0xf]
    %v393 = vld [vmem:[%s5 + $0x24] sm:$0xf]
    %v394 = vld [vmem:[%s5 + $0x28] sm:$0xf]
    %v395 = vld [vmem:[%s5 + $0x2c] sm:$0xf]
    %v396 = vld [vmem:[%s5 + $0x30] sm:$0xf]
    %v397 = vld [vmem:[%s5 + $0x34] sm:$0xf]
    %v398 = vld [vmem:[%s5 + $0x38] sm:$0xf]
    %v399 = vld [vmem:[%s5 + $0x3c] sm:$0xf]
    %v400 = vld [vmem:[%s5 + $0x40] sm:$0xf]
    %v401 = vld [vmem:[%s5 + $0x44] sm:$0xf]
    %v402 = vld [vmem:[%s5 + $0x48] sm:$0xf]
    %v403 = vld [vmem:[%s5 + $0x4c] sm:$0xf]
    %v404 = vld [vmem:[%s5 + $0x50] sm:$0xf]
    %v405 = vld [vmem:[%s5 + $0x54] sm:$0xf]
    %v406 = vld [vmem:[%s5 + $0x58] sm:$0xf]
    %v407 = vld [vmem:[%s5 + $0x5c] sm:$0xf]
    %v408 = vld [vmem:[%s5 + $0x60] sm:$0xf]
    %v409 = vld [vmem:[%s5 + $0x64] sm:$0xf]
    %v410 = vld [vmem:[%s5 + $0x68] sm:$0xf]
    %v411 = vld [vmem:[%s5 + $0x6c] sm:$0xf]
    %v412 = vld [vmem:[%s5 + $0x70] sm:$0xf]
    %v413 = vld [vmem:[%s5 + $0x74] sm:$0xf]
    %v414 = vld [vmem:[%s5 + $0x78] sm:$0xf]
    %v415 = vld [vmem:[%s5 + $0x7c] sm:$0xf]
    %v416 = vld [vmem:[%s6] sm:$0x1]
    %v418 = vlaneseq
    %v419 = vshrl.u32 %v418, 7
    %v420 = vsub.s32 0, %v419
    %v421 = vrot.slane %v416, %v420
    %v455 = vunpack.c.l.b16 %v384
    %v456 = vunpack.c.l.b16 %v385
    %v457 = vunpack.c.l.b16 %v386
    %v458 = vunpack.c.l.b16 %v387
    %v459 = vunpack.c.l.b16 %v388
    %v460 = vunpack.c.l.b16 %v389
    %v461 = vunpack.c.l.b16 %v390
    %v462 = vunpack.c.l.b16 %v391
    %v463 = vunpack.c.l.b16 %v392
    %v464 = vunpack.c.l.b16 %v393
    %v465 = vunpack.c.l.b16 %v394
    %v466 = vunpack.c.l.b16 %v395
    %v467 = vunpack.c.l.b16 %v396
    %v468 = vunpack.c.l.b16 %v397
    %v469 = vunpack.c.l.b16 %v398
    %v470 = vunpack.c.l.b16 %v399
    %v471 = vunpack.c.l.b16 %v400
    %v472 = vunpack.c.l.b16 %v401
    %v473 = vunpack.c.l.b16 %v402
    %v474 = vunpack.c.l.b16 %v403
    %v475 = vunpack.c.l.b16 %v404
    %v476 = vunpack.c.l.b16 %v405
    %v477 = vunpack.c.l.b16 %v406
    %v478 = vunpack.c.l.b16 %v407
    %v479 = vunpack.c.l.b16 %v408
    %v480 = vunpack.c.l.b16 %v409
    %v481 = vunpack.c.l.b16 %v410
    %v482 = vunpack.c.l.b16 %v411
    %v483 = vunpack.c.l.b16 %v412
    %v484 = vunpack.c.l.b16 %v413
    %v485 = vunpack.c.l.b16 %v414
    %v486 = vunpack.c.l.b16 %v415
    %v487 = vpack.c.b16 %v456, %v455
    %v488 = vpack.c.b16 %v458, %v457
    %v489 = vpack.c.b16 %v460, %v459
    %v490 = vpack.c.b16 %v462, %v461
    %v491 = vpack.c.b16 %v464, %v463
    %v492 = vpack.c.b16 %v466, %v465
    %v493 = vpack.c.b16 %v468, %v467
    %v494 = vpack.c.b16 %v470, %v469
    %v495 = vpack.c.b16 %v472, %v471
    %v496 = vpack.c.b16 %v474, %v473
    %v497 = vpack.c.b16 %v476, %v475
    %v498 = vpack.c.b16 %v478, %v477
    %v499 = vpack.c.b16 %v480, %v479
    %v500 = vpack.c.b16 %v482, %v481
    %v501 = vpack.c.b16 %v484, %v483
    %v502 = vpack.c.b16 %v486, %v485
    %519 = vmatprep.subr.bf16.mxu0 0
    %520 = vmatpush1.bf16.msra.mxu0 %v487
    %521 = vmatprep.subr.bf16.mxu0 0
    %522 = vmatpush1.bf16.msra.mxu0 %v488
    %523 = vmatprep.subr.bf16.mxu0 0
    %524 = vmatpush1.bf16.msra.mxu0 %v489
    %525 = vmatprep.subr.bf16.mxu0 0
    %526 = vmatpush1.bf16.msra.mxu0 %v490
    %527 = vmatprep.subr.bf16.mxu0 0
    %528 = vmatpush1.bf16.msra.mxu0 %v491
    %529 = vmatprep.subr.bf16.mxu0 0
    %530 = vmatpush1.bf16.msra.mxu0 %v492
    %531 = vmatprep.subr.bf16.mxu0 0
    %532 = vmatpush1.bf16.msra.mxu0 %v493
    %533 = vmatprep.subr.bf16.mxu0 0
    %534 = vmatpush1.bf16.msra.mxu0 %v494
    %535 = vmatprep.subr.bf16.mxu0 0
    %536 = vmatpush1.bf16.msra.mxu0 %v495
    %537 = vmatprep.subr.bf16.mxu0 0
    %538 = vmatpush1.bf16.msra.mxu0 %v496
    %539 = vmatprep.subr.bf16.mxu0 0
    %540 = vmatpush1.bf16.msra.mxu0 %v497
    %541 = vmatprep.subr.bf16.mxu0 0
    %542 = vmatpush1.bf16.msra.mxu0 %v498
    %543 = vmatprep.subr.bf16.mxu0 0
    %544 = vmatpush1.bf16.msra.mxu0 %v499
    %545 = vmatprep.subr.bf16.mxu0 0
    %546 = vmatpush1.bf16.msra.mxu0 %v500
    %547 = vmatprep.subr.bf16.mxu0 0
    %548 = vmatpush1.bf16.msra.mxu0 %v501
    %549 = vmatprep.subr.bf16.mxu0 0
    %550 = vmatpush1.bf16.msra.mxu0 %v502
    %551 = vmatprep.mubr.bf16.mxu0 %v383
    %552 = vmatmul.mubr.bf16.gmra.mrb[0].mxu0 %v382
    %v553 = vpop.f32.mrb[0].mxu0
    %v554 = vadd.f32 %v421, %v553
    %v555 = vpop.f32.mrb[0].mxu0
    %v556 = vpop.f32.mrb[0].mxu0
    %v557 = vpop.f32.mrb[0].mxu0
    %558 = vdwg.mxu0
    %v559 = vmax.f32 %v554, 0.0
    %v560 = vpack.c.bf16 %v559, %v559
    %v561 = vld [vmem:[%s7] sm:$0xf]
    %v562 = vld [vmem:[%s7 + $0x4] sm:$0xf]
    %v563 = vld [vmem:[%s7 + $0x8] sm:$0xf]
    %v564 = vld [vmem:[%s7 + $0xc] sm:$0xf]
    %v565 = vld [vmem:[%s7 + $0x10] sm:$0xf]
    %v566 = vld [vmem:[%s7 + $0x14] sm:$0xf]
    %v567 = vld [vmem:[%s7 + $0x18] sm:$0xf]
    %v568 = vld [vmem:[%s7 + $0x1c] sm:$0xf]
    %v569 = vld [vmem:[%s8] sm:$0x1]
    %v571 = vlaneseq
    %v572 = vshrl.u32 %v571, 7
    %v573 = vsub.s32 0, %v572
    %v574 = vrot.slane %v569, %v573
    %v584 = vunpack.c.l.b16 %v561
    %v585 = vunpack.c.l.b16 %v562
    %v586 = vunpack.c.l.b16 %v563
    %v587 = vunpack.c.l.b16 %v564
    %v588 = vunpack.c.l.b16 %v565
    %v589 = vunpack.c.l.b16 %v566
    %v590 = vunpack.c.l.b16 %v567
    %v591 = vunpack.c.l.b16 %v568
    %v592 = vpack.c.b16 %v585, %v584
    %v593 = vpack.c.b16 %v587, %v586
    %v594 = vpack.c.b16 %v589, %v588
    %v595 = vpack.c.b16 %v591, %v590
    %vm600 = vcmask 523264
    %v602 = vsel %vm600, %v560, 0
    %604 = vmatprep.subr.bf16.mxu0 0
    %605 = vmatpush1.bf16.msra.mxu0 %v592
    %606 = vmatprep.subr.bf16.mxu0 0
    %607 = vmatpush1.bf16.msra.mxu0 %v593
    %608 = vmatprep.subr.bf16.mxu0 0
    %609 = vmatpush1.bf16.msra.mxu0 %v594
    %610 = vmatprep.subr.bf16.mxu0 0
    %611 = vmatpush1.bf16.msra.mxu0 %v595
    %612 = vmatprep.subr.bf16.mxu0 0
    %613 = vmatpush1.bf16.msra.mxu0 0
    %614 = vmatprep.subr.bf16.mxu0 0
    %615 = vmatpush1.bf16.msra.mxu0 0
    %616 = vmatprep.subr.bf16.mxu0 0
    %617 = vmatpush1.bf16.msra.mxu0 0
    %618 = vmatprep.subr.bf16.mxu0 0
    %619 = vmatpush1.bf16.msra.mxu0 0
    %620 = vmatprep.subr.bf16.mxu0 0
    %621 = vmatpush1.bf16.msra.mxu0 0
    %622 = vmatprep.subr.bf16.mxu0 0
    %623 = vmatpush1.bf16.msra.mxu0 0
    %624 = vmatprep.subr.bf16.mxu0 0
    %625 = vmatpush1.bf16.msra.mxu0 0
    %626 = vmatprep.subr.bf16.mxu0 0
    %627 = vmatpush1.bf16.msra.mxu0 0
    %628 = vmatprep.subr.bf16.mxu0 0
    %629 = vmatpush1.bf16.msra.mxu0 0
    %630 = vmatprep.subr.bf16.mxu0 0
    %631 = vmatpush1.bf16.msra.mxu0 0
    %632 = vmatprep.subr.bf16.mxu0 0
    %633 = vmatpush1.bf16.msra.mxu0 0
    %634 = vmatprep.subr.bf16.mxu0 0
    %635 = vmatpush1.bf16.msra.mxu0 0
    %636 = vmatprep.mubr.bf16.mxu0 0
    %637 = vmatmul.mubr.bf16.gmra.mrb[0].mxu0 %v602
    %v638 = vpop.f32.mrb[0].mxu0
    %v639 = vadd.f32 %v574, %v638
    %v640 = vpop.f32.mrb[0].mxu0
    %v641 = vpop.f32.mrb[0].mxu0
    %v642 = vpop.f32.mrb[0].mxu0
    %643 = vdwg.mxu0
    %vm644 = vcmask 64512
    %645 = vst.msk [vmem:[#allocation5] sm:$0xff] %vm644, %v639
    // Predicated region
    $region42: #{tpu_custom_call.1} parent=1 // pred_check
      _
    $region43: #{tpu_custom_call.1} parent=1 // pred_check_branch
      %647 = sbr.rel (0) target = $region45
    $region44: #{tpu_custom_call.1} parent=1 // pred_region
      %s649 = ssub.s32 128, 32
      %650 = vsyncadd [#allocation4], %s649
      %s651 = sshll.u32 [#allocation5], 4
      %s652 = int_to_ptr.vmem [resolvable:$true] %s651
      %657 = dma.vmem_to_hbm [thread:$0]  %s652, 32, %s9, [#allocation4], 32, 32, 2
    $region45: #{tpu_custom_call.1} parent=1 // pred_fallthru
      _
    // Predicated region
    $region46: #{tpu_custom_call.1} parent=1 // pred_check
      _
    $region47: #{tpu_custom_call.1} parent=1 // pred_check_branch
      %659 = sbr.rel (0) target = $region49
    $region48: #{tpu_custom_call.1} parent=1 // pred_region
      %660 = dma.done [#allocation4], 128
    $region49: #{tpu_custom_call.1} parent=1 // pred_fallthru
      _
    %661 = vsyncpa [#allocation3], 1
    %662 = vsyncpa [#allocation4], 1

</llo_original>
